<compile_context>
chip_gen: v7x
topology: tpu7x:2x2x1
jax: 0.10.0
libtpu: 0.0.40
codegen_flags: <defaults>
</compile_context>

<pallas_src>
import functools

import jax
import jax.numpy as jnp
from jax.experimental import pallas as pl
from jax.experimental.pallas import tpu as pltpu

NA = 3            # anchors per scale (YOLOv5 convention)
NC = 2            # synthetic number of classes
NO = NC + 5       # outputs per anchor (x, y, w, h, obj, classes)
HEAD_COUT = 32    # Detect head Cout (NA*NO = 21) lane-padded to 32

# Safe on every generation at these block sizes.
# TODO(synk): at real YOLO resolutions derive row-slab blocking + this limit
# from pltpu.get_tpu_info().vmem_capacity_bytes (<= ~48 MiB on v7x, more on
# v5e/v6e) and move to a (B, row_groups) grid instead of whole-image blocks.
_VMEM_LIMIT = 48 * 1024 * 1024


# ---------------------------------------------------------------------------
# Pallas kernel 1: stride-1 spatial conv, whole image per grid step.
#   A = concat of kh*kw shifted tap slices along K for every output row,
#   then ONE (Ho*Wo, K) x (K, Cout) MXU matmul with fused bias + SiLU.
# ---------------------------------------------------------------------------
def _conv_s1_kernel(x_ref, w_ref, b_ref, o_ref, *, kh, kw, ho, wo, act):
    x = x_ref[0]                                  # (Hp, Wp, Cin) bf16, one load
    rows = []
    for m in range(ho):                           # static unroll (small Ho)
        taps = [x[m + i, j:j + wo, :] for i in range(kh) for j in range(kw)]
        rows.append(jnp.concatenate(taps, axis=-1))          # (Wo, kh*kw*Cin)
    a = jnp.concatenate(rows, axis=0)                         # (Ho*Wo, K)
    z = jnp.dot(a, w_ref[...], preferred_element_type=jnp.float32)
    z = z + b_ref[...]                            # bias in f32
    if act == "silu":
        z = z * jax.nn.sigmoid(z)                 # exp/recip on the EUP slot
    elif act == "sigmoid":
        z = jax.nn.sigmoid(z)
    o_ref[0] = z.astype(o_ref.dtype)              # single store of the image


def conv_s1(x_pad, w_flat, bias, *, kh, kw, act="silu", out_dtype=jnp.bfloat16):
    """Stride-1 conv on an already spatially padded NHWC bf16 tensor.

    x_pad:  (B, Hp, Wp, Cin) bf16
    w_flat: (kh*kw*Cin, Cout) bf16 (tap-row, tap-col, channel ordered K)
    bias:   (1, Cout) f32
    Returns (B, Ho*Wo, Cout); reshaping to (B, Ho, Wo, Cout) is layout-free.
    """
    B, Hp, Wp, Cin = x_pad.shape
    K, Cout = w_flat.shape
    Ho, Wo = Hp - kh + 1, Wp - kw + 1
    assert K == kh * kw * Cin

    bytes_accessed = (x_pad.size * x_pad.dtype.itemsize + w_flat.size * 2
                      + bias.size * 4
                      + B * Ho * Wo * Cout * jnp.dtype(out_dtype).itemsize)

    return pl.pallas_call(
        functools.partial(_conv_s1_kernel, kh=kh, kw=kw, ho=Ho, wo=Wo, act=act),
        out_shape=jax.ShapeDtypeStruct((B, Ho * Wo, Cout), out_dtype),
        grid=(B,),                                 # whole image per step
        in_specs=[
            pl.BlockSpec((1, Hp, Wp, Cin), lambda b: (b, 0, 0, 0)),
            pl.BlockSpec((K, Cout), lambda b: (0, 0)),    # full filter, resident
            pl.BlockSpec((1, Cout), lambda b: (0, 0)),
        ],
        out_specs=pl.BlockSpec((1, Ho * Wo, Cout), lambda b: (b, 0, 0)),
        compiler_params=pltpu.CompilerParams(
            dimension_semantics=("parallel",),     # B >= 2 feeds both v7x TCs
            vmem_limit_bytes=_VMEM_LIMIT),
        cost_estimate=pl.CostEstimate(
            flops=2 * B * Ho * Wo * K * Cout,
            transcendentals=B * Ho * Wo * Cout,
            bytes_accessed=bytes_accessed),
    )(x_pad, w_flat, bias)


# ---------------------------------------------------------------------------
# Pallas kernel 2: fused bottleneck + Detect head, whole image per grid step.
#   cv1 (1x1, SiLU)  ->  halo-pad in VMEM  ->  cv2 (3x3 s1, SiLU, wide-K matmul)
#   -> residual add  ->  head (1x1, sigmoid, Cout lane-padded to 32).
#   The 8-channel cv1 intermediate never leaves VMEM.
# ---------------------------------------------------------------------------
def _bottleneck_head_kernel(x_ref, w1_ref, b1_ref, w2_ref, b2_ref, wh_ref, bh_ref,
                            o_ref, pad_ref, *, h, w, kh, kw):
    x = x_ref[0]                                              # (H*W, Cx) bf16

    # cv1: 1x1 conv == matmul, fused SiLU.
    y = jnp.dot(x, w1_ref[...], preferred_element_type=jnp.float32) + b1_ref[...]
    y = (y * jax.nn.sigmoid(y)).astype(jnp.bfloat16)          # (H*W, Cmid)

    # Halo-pad cv1's output into a VMEM scratch (no XLA pad op, no HBM trip).
    pad_ref[...] = jnp.zeros_like(pad_ref)
    for m in range(h):
        pad_ref[m + 1, 1:w + 1, :] = y[m * w:(m + 1) * w, :]

    # cv2: 3x3 stride-1 conv as a single wide-K matmul (K = kh*kw*Cmid).
    xp = pad_ref[...]
    rows = []
    for m in range(h):
        taps = [xp[m + i, j:j + w, :] for i in range(kh) for j in range(kw)]
        rows.append(jnp.concatenate(taps, axis=-1))
    a = jnp.concatenate(rows, axis=0)                         # (H*W, K)
    z = jnp.dot(a, w2_ref[...], preferred_element_type=jnp.float32) + b2_ref[...]
    z = z * jax.nn.sigmoid(z)
    z = z + x.astype(jnp.float32)                             # fused residual add

    # Detect head: 1x1 conv (lane-padded Cout) + sigmoid, f32 output.
    p = jnp.dot(z.astype(jnp.bfloat16), wh_ref[...],
                preferred_element_type=jnp.float32) + bh_ref[...]
    o_ref[0] = jax.nn.sigmoid(p).astype(o_ref.dtype)


def bottleneck_head(x2d, cv1_p, cv2_p, head_p, h, w):
    """x2d: (B, H*W, Cx) bf16 -> (B, H*W, HEAD_COUT) f32."""
    B, M, Cx = x2d.shape
    w1, b1 = cv1_p
    w2, b2 = cv2_p
    wh, bh = head_p
    cmid = w1.shape[1]
    cout = w2.shape[1]
    couth = wh.shape[1]
    kh = kw = 3
    assert M == h * w and w2.shape[0] == kh * kw * cmid

    flops = 2 * B * M * (Cx * cmid + kh * kw * cmid * cout + cout * couth)
    transc = B * M * (cmid + cout + couth)
    bytes_accessed = (x2d.size * x2d.dtype.itemsize
                      + (w1.size + w2.size + wh.size) * 2
                      + (b1.size + b2.size + bh.size) * 4
                      + B * M * couth * 4)

    return pl.pallas_call(
        functools.partial(_bottleneck_head_kernel, h=h, w=w, kh=kh, kw=kw),
        out_shape=jax.ShapeDtypeStruct((B, M, couth), jnp.float32),
        grid=(B,),
        in_specs=[
            pl.BlockSpec((1, M, Cx), lambda b: (b, 0, 0)),
            pl.BlockSpec(w1.shape, lambda b: (0, 0)),     # weights VMEM-resident
            pl.BlockSpec(b1.shape, lambda b: (0, 0)),
            pl.BlockSpec(w2.shape, lambda b: (0, 0)),
            pl.BlockSpec(b2.shape, lambda b: (0, 0)),
            pl.BlockSpec(wh.shape, lambda b: (0, 0)),
            pl.BlockSpec(bh.shape, lambda b: (0, 0)),
        ],
        out_specs=pl.BlockSpec((1, M, couth), lambda b: (b, 0, 0)),
        scratch_shapes=[pltpu.VMEM((h + kh - 1, w + kw - 1, cmid), jnp.bfloat16)],
        compiler_params=pltpu.CompilerParams(
            dimension_semantics=("parallel",),
            vmem_limit_bytes=_VMEM_LIMIT),
        cost_estimate=pl.CostEstimate(flops=flops, transcendentals=transc,
                                      bytes_accessed=bytes_accessed),
    )(x2d, w1, b1, w2, b2, wh, bh)


# ---------------------------------------------------------------------------
# Parameter construction: deterministic synthetic weights, folded ONCE into
# kernel-ready layouts (BatchNorm assumed pre-fused, as YOLOv5 does at export).
# ---------------------------------------------------------------------------
def _init_conv(key, cout, cin, k):
    kw_, kb_ = jax.random.split(key)
    fan_in = cin * k * k
    w = jax.random.normal(kw_, (cout, cin, k, k), jnp.float32) / jnp.sqrt(float(fan_in))
    b = jax.random.normal(kb_, (cout,), jnp.float32) * 0.01
    return w, b


def _prep_conv3_flat(w, b):
    # (Cout, Cin, kh, kw) -> flat (kh*kw*Cin, Cout) bf16, K ordered (i, j, c)
    cout, cin, kh, kw = w.shape
    taps = jnp.transpose(w, (2, 3, 1, 0))                    # (kh, kw, Cin, Cout)
    return (taps.reshape(kh * kw * cin, cout).astype(jnp.bfloat16),
            b.reshape(1, -1).astype(jnp.float32))


def _prep_s2d_flat(w, b):
    # 3x3 stride-2 conv == 2x2 stride-1 conv on a space-to-depth(2) input.
    # K ordered (tap-row a, tap-col bb, s2d channel (p, q, c)) to match the
    # kernel's concat order and the wrapper's space-to-depth channel layout.
    cout, cin, kh, kw = w.shape
    w2 = jnp.zeros((2, 2, 2, 2, cin, cout), jnp.float32)
    for a in range(2):
        for bb in range(2):
            for p in range(2):
                for q in range(2):
                    i, j = 2 * a + p, 2 * bb + q
                    if i < kh and j < kw:
                        w2 = w2.at[a, bb, p, q].set(jnp.transpose(w[:, :, i, j]))
    return (w2.reshape(2 * 2 * 4 * cin, cout).astype(jnp.bfloat16),
            b.reshape(1, -1).astype(jnp.float32))


def _prep_pw(w, b, pad_cout_to=None):
    # (Cout, Cin, 1, 1) -> (Cin, Cout) bf16; optional lane-padding of Cout.
    wt = jnp.transpose(w[:, :, 0, 0], (1, 0))
    bt = b.reshape(1, -1)
    if pad_cout_to is not None:
        extra = pad_cout_to - wt.shape[1]
        wt = jnp.pad(wt, ((0, 0), (0, extra)))
        bt = jnp.pad(bt, ((0, 0), (0, extra)))
    return wt.astype(jnp.bfloat16), bt.astype(jnp.float32)


def init_params(key):
    ks = jax.random.split(key, 5)
    stem_w, stem_b = _init_conv(ks[0], 8, 3, 3)         # 3  -> 8,  3x3 stride 2
    down_w, down_b = _init_conv(ks[1], 16, 8, 3)        # 8  -> 16, 3x3 stride 2
    cv1_w, cv1_b = _init_conv(ks[2], 8, 16, 1)          # bottleneck reduce 1x1
    cv2_w, cv2_b = _init_conv(ks[3], 16, 8, 3)          # bottleneck expand 3x3
    head_w, head_b = _init_conv(ks[4], NA * NO, 16, 1)  # Detect-style 1x1 head
    return {
        "stem": _prep_s2d_flat(stem_w, stem_b),
        "down": _prep_s2d_flat(down_w, down_b),
        "cv1":  _prep_pw(cv1_w, cv1_b),
        "cv2":  _prep_conv3_flat(cv2_w, cv2_b),
        "head": _prep_pw(head_w, head_b, pad_cout_to=HEAD_COUT),
    }


# ---------------------------------------------------------------------------
# Forward pass
# ---------------------------------------------------------------------------
def _pad1(x):
    return jnp.pad(x, ((0, 0), (1, 1), (1, 1), (0, 0)))


def _space_to_depth2(xp):
    # Pure layout transform: (B, Hp, Wp, C) -> (B, Hp/2, Wp/2, 4C).
    B, Hp, Wp, C = xp.shape
    assert Hp % 2 == 0 and Wp % 2 == 0, "stride-2 rewrite needs even padded dims"
    xd = xp.reshape(B, Hp // 2, 2, Wp // 2, 2, C)
    xd = jnp.transpose(xd, (0, 1, 3, 2, 4, 5))
    return xd.reshape(B, Hp // 2, Wp // 2, 4 * C)


def yolov5_tiny_forward(params, x_nchw):
    # NCHW (PyTorch) -> NHWC (kernel layout), bf16 activations from the start.
    x = jnp.transpose(x_nchw, (0, 2, 3, 1)).astype(jnp.bfloat16)
    B, H, W, _ = x.shape

    # stem: 3x3 s2 p1 + SiLU -> pad + space-to-depth (layout only) + fused kernel
    # TODO(synk): fold the pad/space-to-depth halo into the conv BlockSpec
    # (strided 2*m+i row index_map + edge masking) to drop this HBM pass.
    x1 = conv_s1(_space_to_depth2(_pad1(x)), *params["stem"], kh=2, kw=2)
    H1, W1 = H // 2, W // 2
    x1 = x1.reshape(B, H1, W1, x1.shape[-1])     # free: identical memory layout

    # downsample: 3x3 s2 p1 + SiLU
    x2 = conv_s1(_space_to_depth2(_pad1(x1)), *params["down"], kh=2, kw=2)
    H2, W2 = H1 // 2, W1 // 2                    # x2: (B, H2*W2, 16) bf16

    # fused bottleneck (cv1 1x1 -> cv2 3x3 + residual) + Detect head, one kernel
    p = bottleneck_head(x2, params["cv1"], params["cv2"], params["head"], H2, W2)

    p = p[:, :, :NA * NO]                        # drop head lane padding (32->21)
    p = p.reshape(B, H2, W2, NA, NO).transpose(0, 3, 1, 2, 4)
    # TODO(synk): anchor/grid box decoding + NMS of the real Detect head omitted.
    return p


if __name__ == "__main__":
    key = jax.random.PRNGKey(0)
    k_param, k_input = jax.random.split(key)

    params = init_params(k_param)
    x = jax.random.normal(k_input, (2, 3, 16, 16), jnp.float32)

    out = jax.jit(yolov5_tiny_forward)(params, x)
    out = jax.block_until_ready(out)

    assert out.shape == (2, NA, 4, 4, NO), out.shape
    assert bool(jnp.all(jnp.isfinite(out)))
    print("KERNEL_OK")
</pallas_src>

<mosaic_0001>
module attributes {stable_mosaic.version = 11 : i64} {
  func.func @_conv_s1_kernel(%arg0: i32, %arg1: memref<1x9x9x12xbf16, #tpu.memory_space<vmem>>, %arg2: memref<48x8xbf16, #tpu.memory_space<vmem>>, %arg3: memref<1x8xf32, #tpu.memory_space<vmem>>, %arg4: memref<1x64x8xbf16, #tpu.memory_space<vmem>>) attributes {dimension_semantics = [#tpu.dimension_semantics<parallel>], iteration_bounds = array<i64: 2>, scalar_prefetch = 0 : i64, scratch_operands = 0 : i64, tpu.core_type = #tpu.core_type<tc>, window_params = [{transform_indices = @transform_0, window_bounds = array<i64: 1, 9, 9, 12>}, {pipeline_mode = #tpu.pipeline_mode<synchronous>, transform_indices = @transform_1, window_bounds = array<i64: 48, 8>}, {pipeline_mode = #tpu.pipeline_mode<synchronous>, transform_indices = @transform_2, window_bounds = array<i64: 1, 8>}, {transform_indices = @transform_3, window_bounds = array<i64: 1, 64, 8>}]} {
    %c0 = arith.constant 0 : index
    %c0_0 = arith.constant 0 : index
    %c0_1 = arith.constant 0 : index
    %c0_2 = arith.constant 0 : index
    %0 = vector.load %arg1[%c0, %c0_0, %c0_1, %c0_2] : memref<1x9x9x12xbf16, #tpu.memory_space<vmem>>, vector<1x9x9x12xbf16>
    %1 = vector.shape_cast %0 : vector<1x9x9x12xbf16> to vector<9x9x12xbf16>
    %2 = vector.extract_strided_slice %1 {offsets = [0, 0, 0], sizes = [1, 8, 12], strides = [1, 1, 1]} : vector<9x9x12xbf16> to vector<1x8x12xbf16>
    %3 = vector.shape_cast %2 : vector<1x8x12xbf16> to vector<8x12xbf16>
    %4 = vector.extract_strided_slice %1 {offsets = [0, 1, 0], sizes = [1, 8, 12], strides = [1, 1, 1]} : vector<9x9x12xbf16> to vector<1x8x12xbf16>
    %5 = vector.shape_cast %4 : vector<1x8x12xbf16> to vector<8x12xbf16>
    %6 = vector.extract_strided_slice %1 {offsets = [1, 0, 0], sizes = [1, 8, 12], strides = [1, 1, 1]} : vector<9x9x12xbf16> to vector<1x8x12xbf16>
    %7 = vector.shape_cast %6 : vector<1x8x12xbf16> to vector<8x12xbf16>
    %8 = vector.extract_strided_slice %1 {offsets = [1, 1, 0], sizes = [1, 8, 12], strides = [1, 1, 1]} : vector<9x9x12xbf16> to vector<1x8x12xbf16>
    %9 = vector.shape_cast %8 : vector<1x8x12xbf16> to vector<8x12xbf16>
    %10 = tpu.concatenate %3, %5, %7, %9 in 1 : vector<8x12xbf16>, vector<8x12xbf16>, vector<8x12xbf16>, vector<8x12xbf16> -> vector<8x48xbf16>
    %11 = vector.extract_strided_slice %1 {offsets = [1, 0, 0], sizes = [1, 8, 12], strides = [1, 1, 1]} : vector<9x9x12xbf16> to vector<1x8x12xbf16>
    %12 = vector.shape_cast %11 : vector<1x8x12xbf16> to vector<8x12xbf16>
    %13 = vector.extract_strided_slice %1 {offsets = [1, 1, 0], sizes = [1, 8, 12], strides = [1, 1, 1]} : vector<9x9x12xbf16> to vector<1x8x12xbf16>
    %14 = vector.shape_cast %13 : vector<1x8x12xbf16> to vector<8x12xbf16>
    %15 = vector.extract_strided_slice %1 {offsets = [2, 0, 0], sizes = [1, 8, 12], strides = [1, 1, 1]} : vector<9x9x12xbf16> to vector<1x8x12xbf16>
    %16 = vector.shape_cast %15 : vector<1x8x12xbf16> to vector<8x12xbf16>
    %17 = vector.extract_strided_slice %1 {offsets = [2, 1, 0], sizes = [1, 8, 12], strides = [1, 1, 1]} : vector<9x9x12xbf16> to vector<1x8x12xbf16>
    %18 = vector.shape_cast %17 : vector<1x8x12xbf16> to vector<8x12xbf16>
    %19 = tpu.concatenate %12, %14, %16, %18 in 1 : vector<8x12xbf16>, vector<8x12xbf16>, vector<8x12xbf16>, vector<8x12xbf16> -> vector<8x48xbf16>
    %20 = vector.extract_strided_slice %1 {offsets = [2, 0, 0], sizes = [1, 8, 12], strides = [1, 1, 1]} : vector<9x9x12xbf16> to vector<1x8x12xbf16>
    %21 = vector.shape_cast %20 : vector<1x8x12xbf16> to vector<8x12xbf16>
    %22 = vector.extract_strided_slice %1 {offsets = [2, 1, 0], sizes = [1, 8, 12], strides = [1, 1, 1]} : vector<9x9x12xbf16> to vector<1x8x12xbf16>
    %23 = vector.shape_cast %22 : vector<1x8x12xbf16> to vector<8x12xbf16>
    %24 = vector.extract_strided_slice %1 {offsets = [3, 0, 0], sizes = [1, 8, 12], strides = [1, 1, 1]} : vector<9x9x12xbf16> to vector<1x8x12xbf16>
    %25 = vector.shape_cast %24 : vector<1x8x12xbf16> to vector<8x12xbf16>
    %26 = vector.extract_strided_slice %1 {offsets = [3, 1, 0], sizes = [1, 8, 12], strides = [1, 1, 1]} : vector<9x9x12xbf16> to vector<1x8x12xbf16>
    %27 = vector.shape_cast %26 : vector<1x8x12xbf16> to vector<8x12xbf16>
    %28 = tpu.concatenate %21, %23, %25, %27 in 1 : vector<8x12xbf16>, vector<8x12xbf16>, vector<8x12xbf16>, vector<8x12xbf16> -> vector<8x48xbf16>
    %29 = vector.extract_strided_slice %1 {offsets = [3, 0, 0], sizes = [1, 8, 12], strides = [1, 1, 1]} : vector<9x9x12xbf16> to vector<1x8x12xbf16>
    %30 = vector.shape_cast %29 : vector<1x8x12xbf16> to vector<8x12xbf16>
    %31 = vector.extract_strided_slice %1 {offsets = [3, 1, 0], sizes = [1, 8, 12], strides = [1, 1, 1]} : vector<9x9x12xbf16> to vector<1x8x12xbf16>
    %32 = vector.shape_cast %31 : vector<1x8x12xbf16> to vector<8x12xbf16>
    %33 = vector.extract_strided_slice %1 {offsets = [4, 0, 0], sizes = [1, 8, 12], strides = [1, 1, 1]} : vector<9x9x12xbf16> to vector<1x8x12xbf16>
    %34 = vector.shape_cast %33 : vector<1x8x12xbf16> to vector<8x12xbf16>
    %35 = vector.extract_strided_slice %1 {offsets = [4, 1, 0], sizes = [1, 8, 12], strides = [1, 1, 1]} : vector<9x9x12xbf16> to vector<1x8x12xbf16>
    %36 = vector.shape_cast %35 : vector<1x8x12xbf16> to vector<8x12xbf16>
    %37 = tpu.concatenate %30, %32, %34, %36 in 1 : vector<8x12xbf16>, vector<8x12xbf16>, vector<8x12xbf16>, vector<8x12xbf16> -> vector<8x48xbf16>
    %38 = vector.extract_strided_slice %1 {offsets = [4, 0, 0], sizes = [1, 8, 12], strides = [1, 1, 1]} : vector<9x9x12xbf16> to vector<1x8x12xbf16>
    %39 = vector.shape_cast %38 : vector<1x8x12xbf16> to vector<8x12xbf16>
    %40 = vector.extract_strided_slice %1 {offsets = [4, 1, 0], sizes = [1, 8, 12], strides = [1, 1, 1]} : vector<9x9x12xbf16> to vector<1x8x12xbf16>
    %41 = vector.shape_cast %40 : vector<1x8x12xbf16> to vector<8x12xbf16>
    %42 = vector.extract_strided_slice %1 {offsets = [5, 0, 0], sizes = [1, 8, 12], strides = [1, 1, 1]} : vector<9x9x12xbf16> to vector<1x8x12xbf16>
    %43 = vector.shape_cast %42 : vector<1x8x12xbf16> to vector<8x12xbf16>
    %44 = vector.extract_strided_slice %1 {offsets = [5, 1, 0], sizes = [1, 8, 12], strides = [1, 1, 1]} : vector<9x9x12xbf16> to vector<1x8x12xbf16>
    %45 = vector.shape_cast %44 : vector<1x8x12xbf16> to vector<8x12xbf16>
    %46 = tpu.concatenate %39, %41, %43, %45 in 1 : vector<8x12xbf16>, vector<8x12xbf16>, vector<8x12xbf16>, vector<8x12xbf16> -> vector<8x48xbf16>
    %47 = vector.extract_strided_slice %1 {offsets = [5, 0, 0], sizes = [1, 8, 12], strides = [1, 1, 1]} : vector<9x9x12xbf16> to vector<1x8x12xbf16>
    %48 = vector.shape_cast %47 : vector<1x8x12xbf16> to vector<8x12xbf16>
    %49 = vector.extract_strided_slice %1 {offsets = [5, 1, 0], sizes = [1, 8, 12], strides = [1, 1, 1]} : vector<9x9x12xbf16> to vector<1x8x12xbf16>
    %50 = vector.shape_cast %49 : vector<1x8x12xbf16> to vector<8x12xbf16>
    %51 = vector.extract_strided_slice %1 {offsets = [6, 0, 0], sizes = [1, 8, 12], strides = [1, 1, 1]} : vector<9x9x12xbf16> to vector<1x8x12xbf16>
    %52 = vector.shape_cast %51 : vector<1x8x12xbf16> to vector<8x12xbf16>
    %53 = vector.extract_strided_slice %1 {offsets = [6, 1, 0], sizes = [1, 8, 12], strides = [1, 1, 1]} : vector<9x9x12xbf16> to vector<1x8x12xbf16>
    %54 = vector.shape_cast %53 : vector<1x8x12xbf16> to vector<8x12xbf16>
    %55 = tpu.concatenate %48, %50, %52, %54 in 1 : vector<8x12xbf16>, vector<8x12xbf16>, vector<8x12xbf16>, vector<8x12xbf16> -> vector<8x48xbf16>
    %56 = vector.extract_strided_slice %1 {offsets = [6, 0, 0], sizes = [1, 8, 12], strides = [1, 1, 1]} : vector<9x9x12xbf16> to vector<1x8x12xbf16>
    %57 = vector.shape_cast %56 : vector<1x8x12xbf16> to vector<8x12xbf16>
    %58 = vector.extract_strided_slice %1 {offsets = [6, 1, 0], sizes = [1, 8, 12], strides = [1, 1, 1]} : vector<9x9x12xbf16> to vector<1x8x12xbf16>
    %59 = vector.shape_cast %58 : vector<1x8x12xbf16> to vector<8x12xbf16>
    %60 = vector.extract_strided_slice %1 {offsets = [7, 0, 0], sizes = [1, 8, 12], strides = [1, 1, 1]} : vector<9x9x12xbf16> to vector<1x8x12xbf16>
    %61 = vector.shape_cast %60 : vector<1x8x12xbf16> to vector<8x12xbf16>
    %62 = vector.extract_strided_slice %1 {offsets = [7, 1, 0], sizes = [1, 8, 12], strides = [1, 1, 1]} : vector<9x9x12xbf16> to vector<1x8x12xbf16>
    %63 = vector.shape_cast %62 : vector<1x8x12xbf16> to vector<8x12xbf16>
    %64 = tpu.concatenate %57, %59, %61, %63 in 1 : vector<8x12xbf16>, vector<8x12xbf16>, vector<8x12xbf16>, vector<8x12xbf16> -> vector<8x48xbf16>
    %65 = vector.extract_strided_slice %1 {offsets = [7, 0, 0], sizes = [1, 8, 12], strides = [1, 1, 1]} : vector<9x9x12xbf16> to vector<1x8x12xbf16>
    %66 = vector.shape_cast %65 : vector<1x8x12xbf16> to vector<8x12xbf16>
    %67 = vector.extract_strided_slice %1 {offsets = [7, 1, 0], sizes = [1, 8, 12], strides = [1, 1, 1]} : vector<9x9x12xbf16> to vector<1x8x12xbf16>
    %68 = vector.shape_cast %67 : vector<1x8x12xbf16> to vector<8x12xbf16>
    %69 = vector.extract_strided_slice %1 {offsets = [8, 0, 0], sizes = [1, 8, 12], strides = [1, 1, 1]} : vector<9x9x12xbf16> to vector<1x8x12xbf16>
    %70 = vector.shape_cast %69 : vector<1x8x12xbf16> to vector<8x12xbf16>
    %71 = vector.extract_strided_slice %1 {offsets = [8, 1, 0], sizes = [1, 8, 12], strides = [1, 1, 1]} : vector<9x9x12xbf16> to vector<1x8x12xbf16>
    %72 = vector.shape_cast %71 : vector<1x8x12xbf16> to vector<8x12xbf16>
    %73 = tpu.concatenate %66, %68, %70, %72 in 1 : vector<8x12xbf16>, vector<8x12xbf16>, vector<8x12xbf16>, vector<8x12xbf16> -> vector<8x48xbf16>
    %74 = tpu.concatenate %10, %19, %28, %37, %46, %55, %64, %73 in 0 : vector<8x48xbf16>, vector<8x48xbf16>, vector<8x48xbf16>, vector<8x48xbf16>, vector<8x48xbf16>, vector<8x48xbf16>, vector<8x48xbf16>, vector<8x48xbf16> -> vector<64x48xbf16>
    %c0_3 = arith.constant 0 : index
    %c0_4 = arith.constant 0 : index
    %75 = vector.load %arg2[%c0_3, %c0_4] : memref<48x8xbf16, #tpu.memory_space<vmem>>, vector<48x8xbf16>
    %cst = arith.constant dense<0.000000e+00> : vector<64x8xf32>
    %76 = tpu.matmul %74, %75, %cst {dimension_numbers = #tpu.dot_dimension_numbers<[1], [0], [0], [1], [0, 0, 1, 1], [], []>} : vector<64x48xbf16>, vector<48x8xbf16>, vector<64x8xf32> -> vector<64x8xf32>
    %c0_5 = arith.constant 0 : index
    %c0_6 = arith.constant 0 : index
    %77 = vector.load %arg3[%c0_5, %c0_6] : memref<1x8xf32, #tpu.memory_space<vmem>>, vector<1x8xf32>
    %78 = vector.broadcast %77 : vector<1x8xf32> to vector<64x8xf32>
    %79 = arith.addf %76, %78 : vector<64x8xf32>
    %80 = arith.negf %79 : vector<64x8xf32>
    %81 = math.exp %80 : vector<64x8xf32>
    %cst_7 = arith.constant 1.000000e+00 : f32
    %82 = vector.broadcast %cst_7 : f32 to vector<64x8xf32>
    %83 = arith.addf %82, %81 : vector<64x8xf32>
    %84 = arith.divf %82, %83 : vector<64x8xf32>
    %85 = arith.mulf %79, %84 : vector<64x8xf32>
    %86 = arith.truncf %85 : vector<64x8xf32> to vector<64x8xbf16>
    %c0_8 = arith.constant 0 : index
    %c0_9 = arith.constant 0 : index
    %c0_10 = arith.constant 0 : index
    %87 = vector.load %arg4[%c0_8, %c0_9, %c0_10] : memref<1x64x8xbf16, #tpu.memory_space<vmem>>, vector<1x64x8xbf16>
    %88 = vector.shape_cast %87 : vector<1x64x8xbf16> to vector<64x8xbf16>
    %89 = vector.shape_cast %86 : vector<64x8xbf16> to vector<1x64x8xbf16>
    tpu.vector_store %arg4[%c0_8, %c0_9, %c0_10], %89 {strides = array<i32>} : memref<1x64x8xbf16, #tpu.memory_space<vmem>>, vector<1x64x8xbf16>,
    return
  }
  func.func @transform_0(%arg0: i32) -> (i32, i32, i32, i32) {
    %c0_i32 = arith.constant 0 : i32
    %c0_i32_0 = arith.constant 0 : i32
    %c0_i32_1 = arith.constant 0 : i32
    %c0_i32_2 = arith.constant 0 : i32
    return %arg0, %c0_i32, %c0_i32_0, %c0_i32_1 : i32, i32, i32, i32
  }
  func.func @transform_1(%arg0: i32) -> (i32, i32) {
    %c0_i32 = arith.constant 0 : i32
    %c0_i32_0 = arith.constant 0 : i32
    %c0_i32_1 = arith.constant 0 : i32
    return %c0_i32, %c0_i32_0 : i32, i32
  }
  func.func @transform_2(%arg0: i32) -> (i32, i32) {
    %c0_i32 = arith.constant 0 : i32
    %c0_i32_0 = arith.constant 0 : i32
    %c0_i32_1 = arith.constant 0 : i32
    return %c0_i32, %c0_i32_0 : i32, i32
  }
  func.func @transform_3(%arg0: i32) -> (i32, i32, i32) {
    %c0_i32 = arith.constant 0 : i32
    %c0_i32_0 = arith.constant 0 : i32
    %c0_i32_1 = arith.constant 0 : i32
    return %arg0, %c0_i32, %c0_i32_0 : i32, i32, i32
  }
}

module attributes {stable_mosaic.version = 11 : i64} {
  func.func @_bottleneck_head_kernel(%arg0: i32, %arg1: memref<1x16x16xbf16, #tpu.memory_space<vmem>>, %arg2: memref<16x8xbf16, #tpu.memory_space<vmem>>, %arg3: memref<1x8xf32, #tpu.memory_space<vmem>>, %arg4: memref<72x16xbf16, #tpu.memory_space<vmem>>, %arg5: memref<1x16xf32, #tpu.memory_space<vmem>>, %arg6: memref<16x32xbf16, #tpu.memory_space<vmem>>, %arg7: memref<1x32xf32, #tpu.memory_space<vmem>>, %arg8: memref<1x16x32xf32, #tpu.memory_space<vmem>>, %arg9: memref<6x6x8xbf16, #tpu.memory_space<vmem>>) attributes {dimension_semantics = [#tpu.dimension_semantics<parallel>], iteration_bounds = array<i64: 2>, scalar_prefetch = 0 : i64, scratch_operands = 1 : i64, tpu.core_type = #tpu.core_type<tc>, window_params = [{transform_indices = @transform_0, window_bounds = array<i64: 1, 16, 16>}, {pipeline_mode = #tpu.pipeline_mode<synchronous>, transform_indices = @transform_1, window_bounds = array<i64: 16, 8>}, {pipeline_mode = #tpu.pipeline_mode<synchronous>, transform_indices = @transform_2, window_bounds = array<i64: 1, 8>}, {pipeline_mode = #tpu.pipeline_mode<synchronous>, transform_indices = @transform_3, window_bounds = array<i64: 72, 16>}, {pipeline_mode = #tpu.pipeline_mode<synchronous>, transform_indices = @transform_4, window_bounds = array<i64: 1, 16>}, {pipeline_mode = #tpu.pipeline_mode<synchronous>, transform_indices = @transform_5, window_bounds = array<i64: 16, 32>}, {pipeline_mode = #tpu.pipeline_mode<synchronous>, transform_indices = @transform_6, window_bounds = array<i64: 1, 32>}, {transform_indices = @transform_7, window_bounds = array<i64: 1, 16, 32>}]} {
    %c0 = arith.constant 0 : index
    %c0_0 = arith.constant 0 : index
    %c0_1 = arith.constant 0 : index
    %0 = vector.load %arg1[%c0, %c0_0, %c0_1] : memref<1x16x16xbf16, #tpu.memory_space<vmem>>, vector<1x16x16xbf16>
    %1 = vector.shape_cast %0 : vector<1x16x16xbf16> to vector<16x16xbf16>
    %c0_2 = arith.constant 0 : index
    %c0_3 = arith.constant 0 : index
    %2 = vector.load %arg2[%c0_2, %c0_3] : memref<16x8xbf16, #tpu.memory_space<vmem>>, vector<16x8xbf16>
    %cst = arith.constant dense<0.000000e+00> : vector<16x8xf32>
    %3 = tpu.matmul %1, %2, %cst {dimension_numbers = #tpu.dot_dimension_numbers<[1], [0], [0], [1], [0, 0, 1, 1], [], []>} : vector<16x16xbf16>, vector<16x8xbf16>, vector<16x8xf32> -> vector<16x8xf32>
    %c0_4 = arith.constant 0 : index
    %c0_5 = arith.constant 0 : index
    %4 = vector.load %arg3[%c0_4, %c0_5] : memref<1x8xf32, #tpu.memory_space<vmem>>, vector<1x8xf32>
    %5 = vector.broadcast %4 : vector<1x8xf32> to vector<16x8xf32>
    %6 = arith.addf %3, %5 : vector<16x8xf32>
    %7 = arith.negf %6 : vector<16x8xf32>
    %8 = math.exp %7 : vector<16x8xf32>
    %cst_6 = arith.constant 1.000000e+00 : f32
    %9 = vector.broadcast %cst_6 : f32 to vector<16x8xf32>
    %10 = arith.addf %9, %8 : vector<16x8xf32>
    %11 = arith.divf %9, %10 : vector<16x8xf32>
    %12 = arith.mulf %6, %11 : vector<16x8xf32>
    %13 = arith.truncf %12 : vector<16x8xf32> to vector<16x8xbf16>
    %cst_7 = arith.constant 0.000000e+00 : bf16
    %14 = vector.broadcast %cst_7 : bf16 to vector<6x6x8xbf16>
    %c0_8 = arith.constant 0 : index
    %c0_9 = arith.constant 0 : index
    %c0_10 = arith.constant 0 : index
    %15 = vector.load %arg9[%c0_8, %c0_9, %c0_10] : memref<6x6x8xbf16, #tpu.memory_space<vmem>>, vector<6x6x8xbf16>
    tpu.vector_store %arg9[%c0_8, %c0_9, %c0_10], %14 {strides = array<i32>} : memref<6x6x8xbf16, #tpu.memory_space<vmem>>, vector<6x6x8xbf16>,
    %16 = vector.extract_strided_slice %13 {offsets = [0, 0], sizes = [4, 8], strides = [1, 1]} : vector<16x8xbf16> to vector<4x8xbf16>
    %c1 = arith.constant 1 : index
    %c1_11 = arith.constant 1 : index
    %c0_12 = arith.constant 0 : index
    %17 = vector.load %arg9[%c1, %c1_11, %c0_12] : memref<6x6x8xbf16, #tpu.memory_space<vmem>>, vector<1x4x8xbf16>
    %18 = vector.shape_cast %17 : vector<1x4x8xbf16> to vector<4x8xbf16>
    %19 = vector.shape_cast %16 : vector<4x8xbf16> to vector<1x4x8xbf16>
    tpu.vector_store %arg9[%c1, %c1_11, %c0_12], %19 {strides = array<i32>} : memref<6x6x8xbf16, #tpu.memory_space<vmem>>, vector<1x4x8xbf16>,
    %20 = vector.extract_strided_slice %13 {offsets = [4, 0], sizes = [4, 8], strides = [1, 1]} : vector<16x8xbf16> to vector<4x8xbf16>
    %c2 = arith.constant 2 : index
    %c1_13 = arith.constant 1 : index
    %c0_14 = arith.constant 0 : index
    %21 = vector.load %arg9[%c2, %c1_13, %c0_14] : memref<6x6x8xbf16, #tpu.memory_space<vmem>>, vector<1x4x8xbf16>
    %22 = vector.shape_cast %21 : vector<1x4x8xbf16> to vector<4x8xbf16>
    %23 = vector.shape_cast %20 : vector<4x8xbf16> to vector<1x4x8xbf16>
    tpu.vector_store %arg9[%c2, %c1_13, %c0_14], %23 {strides = array<i32>} : memref<6x6x8xbf16, #tpu.memory_space<vmem>>, vector<1x4x8xbf16>,
    %24 = vector.extract_strided_slice %13 {offsets = [8, 0], sizes = [4, 8], strides = [1, 1]} : vector<16x8xbf16> to vector<4x8xbf16>
    %c3 = arith.constant 3 : index
    %c1_15 = arith.constant 1 : index
    %c0_16 = arith.constant 0 : index
    %25 = vector.load %arg9[%c3, %c1_15, %c0_16] : memref<6x6x8xbf16, #tpu.memory_space<vmem>>, vector<1x4x8xbf16>
    %26 = vector.shape_cast %25 : vector<1x4x8xbf16> to vector<4x8xbf16>
    %27 = vector.shape_cast %24 : vector<4x8xbf16> to vector<1x4x8xbf16>
    tpu.vector_store %arg9[%c3, %c1_15, %c0_16], %27 {strides = array<i32>} : memref<6x6x8xbf16, #tpu.memory_space<vmem>>, vector<1x4x8xbf16>,
    %28 = vector.extract_strided_slice %13 {offsets = [12, 0], sizes = [4, 8], strides = [1, 1]} : vector<16x8xbf16> to vector<4x8xbf16>
    %c4 = arith.constant 4 : index
    %c1_17 = arith.constant 1 : index
    %c0_18 = arith.constant 0 : index
    %29 = vector.load %arg9[%c4, %c1_17, %c0_18] : memref<6x6x8xbf16, #tpu.memory_space<vmem>>, vector<1x4x8xbf16>
    %30 = vector.shape_cast %29 : vector<1x4x8xbf16> to vector<4x8xbf16>
    %31 = vector.shape_cast %28 : vector<4x8xbf16> to vector<1x4x8xbf16>
    tpu.vector_store %arg9[%c4, %c1_17, %c0_18], %31 {strides = array<i32>} : memref<6x6x8xbf16, #tpu.memory_space<vmem>>, vector<1x4x8xbf16>,
    %c0_19 = arith.constant 0 : index
    %c0_20 = arith.constant 0 : index
    %c0_21 = arith.constant 0 : index
    %32 = vector.load %arg9[%c0_19, %c0_20, %c0_21] : memref<6x6x8xbf16, #tpu.memory_space<vmem>>, vector<6x6x8xbf16>
    %33 = vector.extract_strided_slice %32 {offsets = [0, 0, 0], sizes = [1, 4, 8], strides = [1, 1, 1]} : vector<6x6x8xbf16> to vector<1x4x8xbf16>
    %34 = vector.shape_cast %33 : vector<1x4x8xbf16> to vector<4x8xbf16>
    %35 = vector.extract_strided_slice %32 {offsets = [0, 1, 0], sizes = [1, 4, 8], strides = [1, 1, 1]} : vector<6x6x8xbf16> to vector<1x4x8xbf16>
    %36 = vector.shape_cast %35 : vector<1x4x8xbf16> to vector<4x8xbf16>
    %37 = vector.extract_strided_slice %32 {offsets = [0, 2, 0], sizes = [1, 4, 8], strides = [1, 1, 1]} : vector<6x6x8xbf16> to vector<1x4x8xbf16>
    %38 = vector.shape_cast %37 : vector<1x4x8xbf16> to vector<4x8xbf16>
    %39 = vector.extract_strided_slice %32 {offsets = [1, 0, 0], sizes = [1, 4, 8], strides = [1, 1, 1]} : vector<6x6x8xbf16> to vector<1x4x8xbf16>
    %40 = vector.shape_cast %39 : vector<1x4x8xbf16> to vector<4x8xbf16>
    %41 = vector.extract_strided_slice %32 {offsets = [1, 1, 0], sizes = [1, 4, 8], strides = [1, 1, 1]} : vector<6x6x8xbf16> to vector<1x4x8xbf16>
    %42 = vector.shape_cast %41 : vector<1x4x8xbf16> to vector<4x8xbf16>
    %43 = vector.extract_strided_slice %32 {offsets = [1, 2, 0], sizes = [1, 4, 8], strides = [1, 1, 1]} : vector<6x6x8xbf16> to vector<1x4x8xbf16>
    %44 = vector.shape_cast %43 : vector<1x4x8xbf16> to vector<4x8xbf16>
    %45 = vector.extract_strided_slice %32 {offsets = [2, 0, 0], sizes = [1, 4, 8], strides = [1, 1, 1]} : vector<6x6x8xbf16> to vector<1x4x8xbf16>
    %46 = vector.shape_cast %45 : vector<1x4x8xbf16> to vector<4x8xbf16>
    %47 = vector.extract_strided_slice %32 {offsets = [2, 1, 0], sizes = [1, 4, 8], strides = [1, 1, 1]} : vector<6x6x8xbf16> to vector<1x4x8xbf16>
    %48 = vector.shape_cast %47 : vector<1x4x8xbf16> to vector<4x8xbf16>
    %49 = vector.extract_strided_slice %32 {offsets = [2, 2, 0], sizes = [1, 4, 8], strides = [1, 1, 1]} : vector<6x6x8xbf16> to vector<1x4x8xbf16>
    %50 = vector.shape_cast %49 : vector<1x4x8xbf16> to vector<4x8xbf16>
    %51 = tpu.concatenate %34, %36, %38, %40, %42, %44, %46, %48, %50 in 1 : vector<4x8xbf16>, vector<4x8xbf16>, vector<4x8xbf16>, vector<4x8xbf16>, vector<4x8xbf16>, vector<4x8xbf16>, vector<4x8xbf16>, vector<4x8xbf16>, vector<4x8xbf16> -> vector<4x72xbf16>
    %52 = vector.extract_strided_slice %32 {offsets = [1, 0, 0], sizes = [1, 4, 8], strides = [1, 1, 1]} : vector<6x6x8xbf16> to vector<1x4x8xbf16>
    %53 = vector.shape_cast %52 : vector<1x4x8xbf16> to vector<4x8xbf16>
    %54 = vector.extract_strided_slice %32 {offsets = [1, 1, 0], sizes = [1, 4, 8], strides = [1, 1, 1]} : vector<6x6x8xbf16> to vector<1x4x8xbf16>
    %55 = vector.shape_cast %54 : vector<1x4x8xbf16> to vector<4x8xbf16>
    %56 = vector.extract_strided_slice %32 {offsets = [1, 2, 0], sizes = [1, 4, 8], strides = [1, 1, 1]} : vector<6x6x8xbf16> to vector<1x4x8xbf16>
    %57 = vector.shape_cast %56 : vector<1x4x8xbf16> to vector<4x8xbf16>
    %58 = vector.extract_strided_slice %32 {offsets = [2, 0, 0], sizes = [1, 4, 8], strides = [1, 1, 1]} : vector<6x6x8xbf16> to vector<1x4x8xbf16>
    %59 = vector.shape_cast %58 : vector<1x4x8xbf16> to vector<4x8xbf16>
    %60 = vector.extract_strided_slice %32 {offsets = [2, 1, 0], sizes = [1, 4, 8], strides = [1, 1, 1]} : vector<6x6x8xbf16> to vector<1x4x8xbf16>
    %61 = vector.shape_cast %60 : vector<1x4x8xbf16> to vector<4x8xbf16>
    %62 = vector.extract_strided_slice %32 {offsets = [2, 2, 0], sizes = [1, 4, 8], strides = [1, 1, 1]} : vector<6x6x8xbf16> to vector<1x4x8xbf16>
    %63 = vector.shape_cast %62 : vector<1x4x8xbf16> to vector<4x8xbf16>
    %64 = vector.extract_strided_slice %32 {offsets = [3, 0, 0], sizes = [1, 4, 8], strides = [1, 1, 1]} : vector<6x6x8xbf16> to vector<1x4x8xbf16>
    %65 = vector.shape_cast %64 : vector<1x4x8xbf16> to vector<4x8xbf16>
    %66 = vector.extract_strided_slice %32 {offsets = [3, 1, 0], sizes = [1, 4, 8], strides = [1, 1, 1]} : vector<6x6x8xbf16> to vector<1x4x8xbf16>
    %67 = vector.shape_cast %66 : vector<1x4x8xbf16> to vector<4x8xbf16>
    %68 = vector.extract_strided_slice %32 {offsets = [3, 2, 0], sizes = [1, 4, 8], strides = [1, 1, 1]} : vector<6x6x8xbf16> to vector<1x4x8xbf16>
    %69 = vector.shape_cast %68 : vector<1x4x8xbf16> to vector<4x8xbf16>
    %70 = tpu.concatenate %53, %55, %57, %59, %61, %63, %65, %67, %69 in 1 : vector<4x8xbf16>, vector<4x8xbf16>, vector<4x8xbf16>, vector<4x8xbf16>, vector<4x8xbf16>, vector<4x8xbf16>, vector<4x8xbf16>, vector<4x8xbf16>, vector<4x8xbf16> -> vector<4x72xbf16>
    %71 = vector.extract_strided_slice %32 {offsets = [2, 0, 0], sizes = [1, 4, 8], strides = [1, 1, 1]} : vector<6x6x8xbf16> to vector<1x4x8xbf16>
    %72 = vector.shape_cast %71 : vector<1x4x8xbf16> to vector<4x8xbf16>
    %73 = vector.extract_strided_slice %32 {offsets = [2, 1, 0], sizes = [1, 4, 8], strides = [1, 1, 1]} : vector<6x6x8xbf16> to vector<1x4x8xbf16>
    %74 = vector.shape_cast %73 : vector<1x4x8xbf16> to vector<4x8xbf16>
    %75 = vector.extract_strided_slice %32 {offsets = [2, 2, 0], sizes = [1, 4, 8], strides = [1, 1, 1]} : vector<6x6x8xbf16> to vector<1x4x8xbf16>
    %76 = vector.shape_cast %75 : vector<1x4x8xbf16> to vector<4x8xbf16>
    %77 = vector.extract_strided_slice %32 {offsets = [3, 0, 0], sizes = [1, 4, 8], strides = [1, 1, 1]} : vector<6x6x8xbf16> to vector<1x4x8xbf16>
    %78 = vector.shape_cast %77 : vector<1x4x8xbf16> to vector<4x8xbf16>
    %79 = vector.extract_strided_slice %32 {offsets = [3, 1, 0], sizes = [1, 4, 8], strides = [1, 1, 1]} : vector<6x6x8xbf16> to vector<1x4x8xbf16>
    %80 = vector.shape_cast %79 : vector<1x4x8xbf16> to vector<4x8xbf16>
    %81 = vector.extract_strided_slice %32 {offsets = [3, 2, 0], sizes = [1, 4, 8], strides = [1, 1, 1]} : vector<6x6x8xbf16> to vector<1x4x8xbf16>
    %82 = vector.shape_cast %81 : vector<1x4x8xbf16> to vector<4x8xbf16>
    %83 = vector.extract_strided_slice %32 {offsets = [4, 0, 0], sizes = [1, 4, 8], strides = [1, 1, 1]} : vector<6x6x8xbf16> to vector<1x4x8xbf16>
    %84 = vector.shape_cast %83 : vector<1x4x8xbf16> to vector<4x8xbf16>
    %85 = vector.extract_strided_slice %32 {offsets = [4, 1, 0], sizes = [1, 4, 8], strides = [1, 1, 1]} : vector<6x6x8xbf16> to vector<1x4x8xbf16>
    %86 = vector.shape_cast %85 : vector<1x4x8xbf16> to vector<4x8xbf16>
    %87 = vector.extract_strided_slice %32 {offsets = [4, 2, 0], sizes = [1, 4, 8], strides = [1, 1, 1]} : vector<6x6x8xbf16> to vector<1x4x8xbf16>
    %88 = vector.shape_cast %87 : vector<1x4x8xbf16> to vector<4x8xbf16>
    %89 = tpu.concatenate %72, %74, %76, %78, %80, %82, %84, %86, %88 in 1 : vector<4x8xbf16>, vector<4x8xbf16>, vector<4x8xbf16>, vector<4x8xbf16>, vector<4x8xbf16>, vector<4x8xbf16>, vector<4x8xbf16>, vector<4x8xbf16>, vector<4x8xbf16> -> vector<4x72xbf16>
    %90 = vector.extract_strided_slice %32 {offsets = [3, 0, 0], sizes = [1, 4, 8], strides = [1, 1, 1]} : vector<6x6x8xbf16> to vector<1x4x8xbf16>
    %91 = vector.shape_cast %90 : vector<1x4x8xbf16> to vector<4x8xbf16>
    %92 = vector.extract_strided_slice %32 {offsets = [3, 1, 0], sizes = [1, 4, 8], strides = [1, 1, 1]} : vector<6x6x8xbf16> to vector<1x4x8xbf16>
    %93 = vector.shape_cast %92 : vector<1x4x8xbf16> to vector<4x8xbf16>
    %94 = vector.extract_strided_slice %32 {offsets = [3, 2, 0], sizes = [1, 4, 8], strides = [1, 1, 1]} : vector<6x6x8xbf16> to vector<1x4x8xbf16>
    %95 = vector.shape_cast %94 : vector<1x4x8xbf16> to vector<4x8xbf16>
    %96 = vector.extract_strided_slice %32 {offsets = [4, 0, 0], sizes = [1, 4, 8], strides = [1, 1, 1]} : vector<6x6x8xbf16> to vector<1x4x8xbf16>
    %97 = vector.shape_cast %96 : vector<1x4x8xbf16> to vector<4x8xbf16>
    %98 = vector.extract_strided_slice %32 {offsets = [4, 1, 0], sizes = [1, 4, 8], strides = [1, 1, 1]} : vector<6x6x8xbf16> to vector<1x4x8xbf16>
    %99 = vector.shape_cast %98 : vector<1x4x8xbf16> to vector<4x8xbf16>
    %100 = vector.extract_strided_slice %32 {offsets = [4, 2, 0], sizes = [1, 4, 8], strides = [1, 1, 1]} : vector<6x6x8xbf16> to vector<1x4x8xbf16>
    %101 = vector.shape_cast %100 : vector<1x4x8xbf16> to vector<4x8xbf16>
    %102 = vector.extract_strided_slice %32 {offsets = [5, 0, 0], sizes = [1, 4, 8], strides = [1, 1, 1]} : vector<6x6x8xbf16> to vector<1x4x8xbf16>
    %103 = vector.shape_cast %102 : vector<1x4x8xbf16> to vector<4x8xbf16>
    %104 = vector.extract_strided_slice %32 {offsets = [5, 1, 0], sizes = [1, 4, 8], strides = [1, 1, 1]} : vector<6x6x8xbf16> to vector<1x4x8xbf16>
    %105 = vector.shape_cast %104 : vector<1x4x8xbf16> to vector<4x8xbf16>
    %106 = vector.extract_strided_slice %32 {offsets = [5, 2, 0], sizes = [1, 4, 8], strides = [1, 1, 1]} : vector<6x6x8xbf16> to vector<1x4x8xbf16>
    %107 = vector.shape_cast %106 : vector<1x4x8xbf16> to vector<4x8xbf16>
    %108 = tpu.concatenate %91, %93, %95, %97, %99, %101, %103, %105, %107 in 1 : vector<4x8xbf16>, vector<4x8xbf16>, vector<4x8xbf16>, vector<4x8xbf16>, vector<4x8xbf16>, vector<4x8xbf16>, vector<4x8xbf16>, vector<4x8xbf16>, vector<4x8xbf16> -> vector<4x72xbf16>
    %109 = tpu.concatenate %51, %70, %89, %108 in 0 : vector<4x72xbf16>, vector<4x72xbf16>, vector<4x72xbf16>, vector<4x72xbf16> -> vector<16x72xbf16>
    %c0_22 = arith.constant 0 : index
    %c0_23 = arith.constant 0 : index
    %110 = vector.load %arg4[%c0_22, %c0_23] : memref<72x16xbf16, #tpu.memory_space<vmem>>, vector<72x16xbf16>
    %cst_24 = arith.constant dense<0.000000e+00> : vector<16x16xf32>
    %111 = tpu.matmul %109, %110, %cst_24 {dimension_numbers = #tpu.dot_dimension_numbers<[1], [0], [0], [1], [0, 0, 1, 1], [], []>} : vector<16x72xbf16>, vector<72x16xbf16>, vector<16x16xf32> -> vector<16x16xf32>
    %c0_25 = arith.constant 0 : index
    %c0_26 = arith.constant 0 : index
    %112 = vector.load %arg5[%c0_25, %c0_26] : memref<1x16xf32, #tpu.memory_space<vmem>>, vector<1x16xf32>
    %113 = vector.broadcast %112 : vector<1x16xf32> to vector<16x16xf32>
    %114 = arith.addf %111, %113 : vector<16x16xf32>
    %115 = arith.negf %114 : vector<16x16xf32>
    %116 = math.exp %115 : vector<16x16xf32>
    %cst_27 = arith.constant 1.000000e+00 : f32
    %117 = vector.broadcast %cst_27 : f32 to vector<16x16xf32>
    %118 = arith.addf %117, %116 : vector<16x16xf32>
    %119 = arith.divf %117, %118 : vector<16x16xf32>
    %120 = arith.mulf %114, %119 : vector<16x16xf32>
    %121 = arith.extf %1 : vector<16x16xbf16> to vector<16x16xf32>
    %122 = arith.addf %120, %121 : vector<16x16xf32>
    %123 = arith.truncf %122 : vector<16x16xf32> to vector<16x16xbf16>
    %c0_28 = arith.constant 0 : index
    %c0_29 = arith.constant 0 : index
    %124 = vector.load %arg6[%c0_28, %c0_29] : memref<16x32xbf16, #tpu.memory_space<vmem>>, vector<16x32xbf16>
    %cst_30 = arith.constant dense<0.000000e+00> : vector<16x32xf32>
    %125 = tpu.matmul %123, %124, %cst_30 {dimension_numbers = #tpu.dot_dimension_numbers<[1], [0], [0], [1], [0, 0, 1, 1], [], []>} : vector<16x16xbf16>, vector<16x32xbf16>, vector<16x32xf32> -> vector<16x32xf32>
    %c0_31 = arith.constant 0 : index
    %c0_32 = arith.constant 0 : index
    %126 = vector.load %arg7[%c0_31, %c0_32] : memref<1x32xf32, #tpu.memory_space<vmem>>, vector<1x32xf32>
    %127 = vector.broadcast %126 : vector<1x32xf32> to vector<16x32xf32>
    %128 = arith.addf %125, %127 : vector<16x32xf32>
    %129 = arith.negf %128 : vector<16x32xf32>
    %130 = math.exp %129 : vector<16x32xf32>
    %cst_33 = arith.constant 1.000000e+00 : f32
    %131 = vector.broadcast %cst_33 : f32 to vector<16x32xf32>
    %132 = arith.addf %131, %130 : vector<16x32xf32>
    %133 = arith.divf %131, %132 : vector<16x32xf32>
    %c0_34 = arith.constant 0 : index
    %c0_35 = arith.constant 0 : index
    %c0_36 = arith.constant 0 : index
    %134 = vector.load %arg8[%c0_34, %c0_35, %c0_36] : memref<1x16x32xf32, #tpu.memory_space<vmem>>, vector<1x16x32xf32>
    %135 = vector.shape_cast %134 : vector<1x16x32xf32> to vector<16x32xf32>
    %136 = vector.shape_cast %133 : vector<16x32xf32> to vector<1x16x32xf32>
    tpu.vector_store %arg8[%c0_34, %c0_35, %c0_36], %136 {strides = array<i32>} : memref<1x16x32xf32, #tpu.memory_space<vmem>>, vector<1x16x32xf32>,
    return
  }
  func.func @transform_0(%arg0: i32) -> (i32, i32, i32) {
    %c0_i32 = arith.constant 0 : i32
    %c0_i32_0 = arith.constant 0 : i32
    %c0_i32_1 = arith.constant 0 : i32
    return %arg0, %c0_i32, %c0_i32_0 : i32, i32, i32
  }
  func.func @transform_1(%arg0: i32) -> (i32, i32) {
    %c0_i32 = arith.constant 0 : i32
    %c0_i32_0 = arith.constant 0 : i32
    %c0_i32_1 = arith.constant 0 : i32
    return %c0_i32, %c0_i32_0 : i32, i32
  }
  func.func @transform_2(%arg0: i32) -> (i32, i32) {
    %c0_i32 = arith.constant 0 : i32
    %c0_i32_0 = arith.constant 0 : i32
    %c0_i32_1 = arith.constant 0 : i32
    return %c0_i32, %c0_i32_0 : i32, i32
  }
  func.func @transform_3(%arg0: i32) -> (i32, i32) {
    %c0_i32 = arith.constant 0 : i32
    %c0_i32_0 = arith.constant 0 : i32
    %c0_i32_1 = arith.constant 0 : i32
    return %c0_i32, %c0_i32_0 : i32, i32
  }
  func.func @transform_4(%arg0: i32) -> (i32, i32) {
    %c0_i32 = arith.constant 0 : i32
    %c0_i32_0 = arith.constant 0 : i32
    %c0_i32_1 = arith.constant 0 : i32
    return %c0_i32, %c0_i32_0 : i32, i32
  }
  func.func @transform_5(%arg0: i32) -> (i32, i32) {
    %c0_i32 = arith.constant 0 : i32
    %c0_i32_0 = arith.constant 0 : i32
    %c0_i32_1 = arith.constant 0 : i32
    return %c0_i32, %c0_i32_0 : i32, i32
  }
  func.func @transform_6(%arg0: i32) -> (i32, i32) {
    %c0_i32 = arith.constant 0 : i32
    %c0_i32_0 = arith.constant 0 : i32
    %c0_i32_1 = arith.constant 0 : i32
    return %c0_i32, %c0_i32_0 : i32, i32
  }
  func.func @transform_7(%arg0: i32) -> (i32, i32, i32) {
    %c0_i32 = arith.constant 0 : i32
    %c0_i32_0 = arith.constant 0 : i32
    %c0_i32_1 = arith.constant 0 : i32
    return %arg0, %c0_i32, %c0_i32_0 : i32, i32, i32
  }
}

module attributes {stable_mosaic.version = 11 : i64} {
  func.func @_conv_s1_kernel(%arg0: i32, %arg1: memref<1x5x5x32xbf16, #tpu.memory_space<vmem>>, %arg2: memref<128x16xbf16, #tpu.memory_space<vmem>>, %arg3: memref<1x16xf32, #tpu.memory_space<vmem>>, %arg4: memref<1x16x16xbf16, #tpu.memory_space<vmem>>) attributes {dimension_semantics = [#tpu.dimension_semantics<parallel>], iteration_bounds = array<i64: 2>, scalar_prefetch = 0 : i64, scratch_operands = 0 : i64, tpu.core_type = #tpu.core_type<tc>, window_params = [{transform_indices = @transform_0, window_bounds = array<i64: 1, 5, 5, 32>}, {pipeline_mode = #tpu.pipeline_mode<synchronous>, transform_indices = @transform_1, window_bounds = array<i64: 128, 16>}, {pipeline_mode = #tpu.pipeline_mode<synchronous>, transform_indices = @transform_2, window_bounds = array<i64: 1, 16>}, {transform_indices = @transform_3, window_bounds = array<i64: 1, 16, 16>}]} {
    %c0 = arith.constant 0 : index
    %c0_0 = arith.constant 0 : index
    %c0_1 = arith.constant 0 : index
    %c0_2 = arith.constant 0 : index
    %0 = vector.load %arg1[%c0, %c0_0, %c0_1, %c0_2] : memref<1x5x5x32xbf16, #tpu.memory_space<vmem>>, vector<1x5x5x32xbf16>
    %1 = vector.shape_cast %0 : vector<1x5x5x32xbf16> to vector<5x5x32xbf16>
    %2 = vector.extract_strided_slice %1 {offsets = [0, 0, 0], sizes = [1, 4, 32], strides = [1, 1, 1]} : vector<5x5x32xbf16> to vector<1x4x32xbf16>
    %3 = vector.shape_cast %2 : vector<1x4x32xbf16> to vector<4x32xbf16>
    %4 = vector.extract_strided_slice %1 {offsets = [0, 1, 0], sizes = [1, 4, 32], strides = [1, 1, 1]} : vector<5x5x32xbf16> to vector<1x4x32xbf16>
    %5 = vector.shape_cast %4 : vector<1x4x32xbf16> to vector<4x32xbf16>
    %6 = vector.extract_strided_slice %1 {offsets = [1, 0, 0], sizes = [1, 4, 32], strides = [1, 1, 1]} : vector<5x5x32xbf16> to vector<1x4x32xbf16>
    %7 = vector.shape_cast %6 : vector<1x4x32xbf16> to vector<4x32xbf16>
    %8 = vector.extract_strided_slice %1 {offsets = [1, 1, 0], sizes = [1, 4, 32], strides = [1, 1, 1]} : vector<5x5x32xbf16> to vector<1x4x32xbf16>
    %9 = vector.shape_cast %8 : vector<1x4x32xbf16> to vector<4x32xbf16>
    %10 = tpu.concatenate %3, %5, %7, %9 in 1 : vector<4x32xbf16>, vector<4x32xbf16>, vector<4x32xbf16>, vector<4x32xbf16> -> vector<4x128xbf16>
    %11 = vector.extract_strided_slice %1 {offsets = [1, 0, 0], sizes = [1, 4, 32], strides = [1, 1, 1]} : vector<5x5x32xbf16> to vector<1x4x32xbf16>
    %12 = vector.shape_cast %11 : vector<1x4x32xbf16> to vector<4x32xbf16>
    %13 = vector.extract_strided_slice %1 {offsets = [1, 1, 0], sizes = [1, 4, 32], strides = [1, 1, 1]} : vector<5x5x32xbf16> to vector<1x4x32xbf16>
    %14 = vector.shape_cast %13 : vector<1x4x32xbf16> to vector<4x32xbf16>
    %15 = vector.extract_strided_slice %1 {offsets = [2, 0, 0], sizes = [1, 4, 32], strides = [1, 1, 1]} : vector<5x5x32xbf16> to vector<1x4x32xbf16>
    %16 = vector.shape_cast %15 : vector<1x4x32xbf16> to vector<4x32xbf16>
    %17 = vector.extract_strided_slice %1 {offsets = [2, 1, 0], sizes = [1, 4, 32], strides = [1, 1, 1]} : vector<5x5x32xbf16> to vector<1x4x32xbf16>
    %18 = vector.shape_cast %17 : vector<1x4x32xbf16> to vector<4x32xbf16>
    %19 = tpu.concatenate %12, %14, %16, %18 in 1 : vector<4x32xbf16>, vector<4x32xbf16>, vector<4x32xbf16>, vector<4x32xbf16> -> vector<4x128xbf16>
    %20 = vector.extract_strided_slice %1 {offsets = [2, 0, 0], sizes = [1, 4, 32], strides = [1, 1, 1]} : vector<5x5x32xbf16> to vector<1x4x32xbf16>
    %21 = vector.shape_cast %20 : vector<1x4x32xbf16> to vector<4x32xbf16>
    %22 = vector.extract_strided_slice %1 {offsets = [2, 1, 0], sizes = [1, 4, 32], strides = [1, 1, 1]} : vector<5x5x32xbf16> to vector<1x4x32xbf16>
    %23 = vector.shape_cast %22 : vector<1x4x32xbf16> to vector<4x32xbf16>
    %24 = vector.extract_strided_slice %1 {offsets = [3, 0, 0], sizes = [1, 4, 32], strides = [1, 1, 1]} : vector<5x5x32xbf16> to vector<1x4x32xbf16>
    %25 = vector.shape_cast %24 : vector<1x4x32xbf16> to vector<4x32xbf16>
    %26 = vector.extract_strided_slice %1 {offsets = [3, 1, 0], sizes = [1, 4, 32], strides = [1, 1, 1]} : vector<5x5x32xbf16> to vector<1x4x32xbf16>
    %27 = vector.shape_cast %26 : vector<1x4x32xbf16> to vector<4x32xbf16>
    %28 = tpu.concatenate %21, %23, %25, %27 in 1 : vector<4x32xbf16>, vector<4x32xbf16>, vector<4x32xbf16>, vector<4x32xbf16> -> vector<4x128xbf16>
    %29 = vector.extract_strided_slice %1 {offsets = [3, 0, 0], sizes = [1, 4, 32], strides = [1, 1, 1]} : vector<5x5x32xbf16> to vector<1x4x32xbf16>
    %30 = vector.shape_cast %29 : vector<1x4x32xbf16> to vector<4x32xbf16>
    %31 = vector.extract_strided_slice %1 {offsets = [3, 1, 0], sizes = [1, 4, 32], strides = [1, 1, 1]} : vector<5x5x32xbf16> to vector<1x4x32xbf16>
    %32 = vector.shape_cast %31 : vector<1x4x32xbf16> to vector<4x32xbf16>
    %33 = vector.extract_strided_slice %1 {offsets = [4, 0, 0], sizes = [1, 4, 32], strides = [1, 1, 1]} : vector<5x5x32xbf16> to vector<1x4x32xbf16>
    %34 = vector.shape_cast %33 : vector<1x4x32xbf16> to vector<4x32xbf16>
    %35 = vector.extract_strided_slice %1 {offsets = [4, 1, 0], sizes = [1, 4, 32], strides = [1, 1, 1]} : vector<5x5x32xbf16> to vector<1x4x32xbf16>
    %36 = vector.shape_cast %35 : vector<1x4x32xbf16> to vector<4x32xbf16>
    %37 = tpu.concatenate %30, %32, %34, %36 in 1 : vector<4x32xbf16>, vector<4x32xbf16>, vector<4x32xbf16>, vector<4x32xbf16> -> vector<4x128xbf16>
    %38 = tpu.concatenate %10, %19, %28, %37 in 0 : vector<4x128xbf16>, vector<4x128xbf16>, vector<4x128xbf16>, vector<4x128xbf16> -> vector<16x128xbf16>
    %c0_3 = arith.constant 0 : index
    %c0_4 = arith.constant 0 : index
    %39 = vector.load %arg2[%c0_3, %c0_4] : memref<128x16xbf16, #tpu.memory_space<vmem>>, vector<128x16xbf16>
    %cst = arith.constant dense<0.000000e+00> : vector<16x16xf32>
    %40 = tpu.matmul %38, %39, %cst {dimension_numbers = #tpu.dot_dimension_numbers<[1], [0], [0], [1], [0, 0, 1, 1], [], []>} : vector<16x128xbf16>, vector<128x16xbf16>, vector<16x16xf32> -> vector<16x16xf32>
    %c0_5 = arith.constant 0 : index
    %c0_6 = arith.constant 0 : index
    %41 = vector.load %arg3[%c0_5, %c0_6] : memref<1x16xf32, #tpu.memory_space<vmem>>, vector<1x16xf32>
    %42 = vector.broadcast %41 : vector<1x16xf32> to vector<16x16xf32>
    %43 = arith.addf %40, %42 : vector<16x16xf32>
    %44 = arith.negf %43 : vector<16x16xf32>
    %45 = math.exp %44 : vector<16x16xf32>
    %cst_7 = arith.constant 1.000000e+00 : f32
    %46 = vector.broadcast %cst_7 : f32 to vector<16x16xf32>
    %47 = arith.addf %46, %45 : vector<16x16xf32>
    %48 = arith.divf %46, %47 : vector<16x16xf32>
    %49 = arith.mulf %43, %48 : vector<16x16xf32>
    %50 = arith.truncf %49 : vector<16x16xf32> to vector<16x16xbf16>
    %c0_8 = arith.constant 0 : index
    %c0_9 = arith.constant 0 : index
    %c0_10 = arith.constant 0 : index
    %51 = vector.load %arg4[%c0_8, %c0_9, %c0_10] : memref<1x16x16xbf16, #tpu.memory_space<vmem>>, vector<1x16x16xbf16>
    %52 = vector.shape_cast %51 : vector<1x16x16xbf16> to vector<16x16xbf16>
    %53 = vector.shape_cast %50 : vector<16x16xbf16> to vector<1x16x16xbf16>
    tpu.vector_store %arg4[%c0_8, %c0_9, %c0_10], %53 {strides = array<i32>} : memref<1x16x16xbf16, #tpu.memory_space<vmem>>, vector<1x16x16xbf16>,
    return
  }
  func.func @transform_0(%arg0: i32) -> (i32, i32, i32, i32) {
    %c0_i32 = arith.constant 0 : i32
    %c0_i32_0 = arith.constant 0 : i32
    %c0_i32_1 = arith.constant 0 : i32
    %c0_i32_2 = arith.constant 0 : i32
    return %arg0, %c0_i32, %c0_i32_0, %c0_i32_1 : i32, i32, i32, i32
  }
  func.func @transform_1(%arg0: i32) -> (i32, i32) {
    %c0_i32 = arith.constant 0 : i32
    %c0_i32_0 = arith.constant 0 : i32
    %c0_i32_1 = arith.constant 0 : i32
    return %c0_i32, %c0_i32_0 : i32, i32
  }
  func.func @transform_2(%arg0: i32) -> (i32, i32) {
    %c0_i32 = arith.constant 0 : i32
    %c0_i32_0 = arith.constant 0 : i32
    %c0_i32_1 = arith.constant 0 : i32
    return %c0_i32, %c0_i32_0 : i32, i32
  }
  func.func @transform_3(%arg0: i32) -> (i32, i32, i32) {
    %c0_i32 = arith.constant 0 : i32
    %c0_i32_0 = arith.constant 0 : i32
    %c0_i32_1 = arith.constant 0 : i32
    return %arg0, %c0_i32, %c0_i32_0 : i32, i32, i32
  }
}

</mosaic_0001>

<llo_original>
// kernel: yolov5_tiny_forward.3
$region0: #{yolov5_tiny_forward.3}
  #allocation0 [shape = 'u32[]', space=smem, size = 0x4, offset = 0x4, fixed_abs, tag = 'smem constant byte address 0x4 - core index']
  #allocation1 [shape = 'u32[144,128]{1,0:T(1,128)}', space=vmem, size = 0x12000, scoped, tag = 'internal scratch']
  %s0 = inlined_call_operand.vmem [shape: bf16[2,9,9,12], index: 0, kind: input, shape index: {}]
  %s1 = inlined_call_operand.vmem [shape: bf16[48,8], index: 1, kind: input, shape index: {}]
  %s2 = inlined_call_operand.vmem [shape: f32[1,8], index: 2, kind: input, shape index: {}]
  %s3 = inlined_call_operand.vmem [shape: bf16[2,64,8], index: 3, kind: output, shape index: {}]
  %s4 = sld [smem:[#allocation0]]
  $region45: #{yolov5_tiny_forward.3} parent=0
    _
  %s6 = ssub.s32 1, %s4
  %s7 = scalar_select 0, %s6, %s4
  loop: start=0, step=1, limit=4
  $region2: #{yolov5_tiny_forward.3} parent=0 // loop_pre_header
    _
  $region3: #{yolov5_tiny_forward.3} parent=0 // loop_header
    %s9 = sphi 0, %s13
    %p10 = scmp.ge.s32.totalorder %s9, 4
    %s19 = sphi 0, %s21
    %s22 = sphi 0, %s19
    %s23 = sphi 0, %s22
    %s39 = sphi 0, %s23
    %s43 = sphi 0, %s43
    %s45 = sphi 0, %s43
    %s46 = sphi 0, %s45
    %s60 = sphi 0, %s46
    %s64 = sphi 0, %s64
    %s66 = sphi 0, %s64
    %s67 = sphi 0, %s66
    %s81 = sphi 0, %s67
    %s87 = sphi 0, %s89
    %s90 = sphi 0, %s87
    %s91 = sphi 0, %s90
    %s107 = sphi 0, %s91
  $region4: #{yolov5_tiny_forward.3} parent=0 // loop_header_branch
    %12 = sbr.rel (%p10) target = $region8
  $region5: #{yolov5_tiny_forward.3} parent=0 // loop_body
    %s14 = ssub.s32 %s9, 1
    %s15 = ssub.s32 %s9, 2
    %s16 = sadd.s32 %s9, 1
    %s17 = ssub.s32 %s9, %s16
    %p18 = scmp.eq.s32.totalorder %s17, 0
    %s20 = sadd.s32 %s19, 1
    %s21 = scalar_select %p18, %s19, %s20
    %p24 = pneg %p18
    %p25 = scmp.eq.s32.totalorder %s9, 1
    %p26 = por %p24, %p25
    %p27 = scmp.ne.s32.totalorder %s19, %s22
    %p28 = scmp.eq.s32.totalorder %s9, 0
    %p29 = por %p27, %p28
    %p30 = scmp.ne.s32.totalorder %s19, %s22
    %p31 = scmp.eq.s32.totalorder %s14, 1
    %p32 = por %p30, %p31
    %p33 = scmp.ne.s32.totalorder %s22, %s23
    %p34 = scmp.eq.s32.totalorder %s14, 0
    %p35 = por %p33, %p34
    %p36 = scmp.ne.s32.totalorder %s22, %s23
    %p37 = scmp.eq.s32.totalorder %s15, 1
    %p38 = por %p36, %p37
    %p40 = scmp.ne.s32.totalorder %s23, %s39
    %p41 = scmp.eq.s32.totalorder %s15, 0
    %p42 = por %p40, %p41
    %s44 = sadd.s32 %s43, 1
    %p47 = scmp.eq.s32.totalorder %s9, 1
    %p48 = scmp.ne.s32.totalorder %s43, %s45
    %p49 = scmp.eq.s32.totalorder %s9, 0
    %p50 = por %p48, %p49
    %p51 = scmp.ne.s32.totalorder %s43, %s45
    %p52 = scmp.eq.s32.totalorder %s14, 1
    %p53 = por %p51, %p52
    %p54 = scmp.ne.s32.totalorder %s45, %s46
    %p55 = scmp.eq.s32.totalorder %s14, 0
    %p56 = por %p54, %p55
    %p57 = scmp.ne.s32.totalorder %s45, %s46
    %p58 = scmp.eq.s32.totalorder %s15, 1
    %p59 = por %p57, %p58
    %p61 = scmp.ne.s32.totalorder %s46, %s60
    %p62 = scmp.eq.s32.totalorder %s15, 0
    %p63 = por %p61, %p62
    %s65 = sadd.s32 %s64, 1
    %p68 = scmp.eq.s32.totalorder %s9, 1
    %p69 = scmp.ne.s32.totalorder %s64, %s66
    %p70 = scmp.eq.s32.totalorder %s9, 0
    %p71 = por %p69, %p70
    %p72 = scmp.ne.s32.totalorder %s64, %s66
    %p73 = scmp.eq.s32.totalorder %s14, 1
    %p74 = por %p72, %p73
    %p75 = scmp.ne.s32.totalorder %s66, %s67
    %p76 = scmp.eq.s32.totalorder %s14, 0
    %p77 = por %p75, %p76
    %p78 = scmp.ne.s32.totalorder %s66, %s67
    %p79 = scmp.eq.s32.totalorder %s15, 1
    %p80 = por %p78, %p79
    %p82 = scmp.ne.s32.totalorder %s67, %s81
    %p83 = scmp.eq.s32.totalorder %s15, 0
    %p84 = por %p82, %p83
    %s85 = ssub.s32 %s9, %s16
    %p86 = scmp.eq.s32.totalorder %s85, 0
    %s88 = sadd.s32 %s87, 1
    %s89 = scalar_select %p86, %s87, %s88
    %p92 = pneg %p86
    %p93 = scmp.eq.s32.totalorder %s9, 1
    %p94 = por %p92, %p93
    %p95 = scmp.ne.s32.totalorder %s87, %s90
    %p96 = scmp.eq.s32.totalorder %s9, 0
    %p97 = por %p95, %p96
    %p98 = scmp.ne.s32.totalorder %s87, %s90
    %p99 = scmp.eq.s32.totalorder %s14, 1
    %p100 = por %p98, %p99
    %p101 = scmp.ne.s32.totalorder %s90, %s91
    %p102 = scmp.eq.s32.totalorder %s14, 0
    %p103 = por %p101, %p102
    %p104 = scmp.ne.s32.totalorder %s90, %s91
    %p105 = scmp.eq.s32.totalorder %s15, 1
    %p106 = por %p104, %p105
    %p108 = scmp.ne.s32.totalorder %s91, %s107
    %p109 = scmp.eq.s32.totalorder %s15, 0
    %p110 = por %p108, %p109
    %p111 = scmp.le.s32.totalorder 1, %s9
    %p112 = scmp.lt.s32.totalorder %s9, 3
    %p113 = pnand %p111, %p112
    %p114 = pneg %p113
    // Predicated region
    $region9: #{yolov5_tiny_forward.3} parent=5 // pred_check
      _
    $region10: #{yolov5_tiny_forward.3} parent=5 // pred_check_branch
      %116 = sbr.rel (%p113) target = $region12
    $region11: #{yolov5_tiny_forward.3} parent=5 // pred_region
      %s117 = ssub.s32 %s9, 1
      // Predicated region
      $region13: #{yolov5_tiny_forward.3} parent=11 // pred_check
        %p118 = pneg %p56
      $region14: #{yolov5_tiny_forward.3} parent=11 // pred_check_branch
        %120 = sbr.rel (%p118) target = $region16
      $region15: #{yolov5_tiny_forward.3} parent=11 // pred_region
        _
      $region16: #{yolov5_tiny_forward.3} parent=11 // pred_fallthru
        _
      // Predicated region
      $region17: #{yolov5_tiny_forward.3} parent=11 // pred_check
        %p121 = pneg %p77
      $region18: #{yolov5_tiny_forward.3} parent=11 // pred_check_branch
        %123 = sbr.rel (%p121) target = $region20
      $region19: #{yolov5_tiny_forward.3} parent=11 // pred_region
        _
      $region20: #{yolov5_tiny_forward.3} parent=11 // pred_fallthru
        _
    $region12: #{yolov5_tiny_forward.3} parent=5 // pred_fallthru
      _
    %p124 = scmp.lt.s32.totalorder %s9, 2
    // Predicated region
    $region21: #{yolov5_tiny_forward.3} parent=5 // pred_check
      %p125 = pneg %p124
    $region22: #{yolov5_tiny_forward.3} parent=5 // pred_check_branch
      %127 = sbr.rel (%p125) target = $region24
    $region23: #{yolov5_tiny_forward.3} parent=5 // pred_region
      // Predicated region
      $region25: #{yolov5_tiny_forward.3} parent=23 // pred_check
        %p128 = pneg %p29
      $region26: #{yolov5_tiny_forward.3} parent=23 // pred_check_branch
        %130 = sbr.rel (%p128) target = $region28
      $region27: #{yolov5_tiny_forward.3} parent=23 // pred_region
        %p131 = scmp.lt.s32.totalorder %s9, 1
        %s132 = scalar_select %p131, %s9, 1
        %s133 = smul.addr %s132, 18
        %s134 = smul.addr %s133, 4
        %s135 = scalar_lea.vmem %s0, %s134
      $region28: #{yolov5_tiny_forward.3} parent=23 // pred_fallthru
        _
    $region24: #{yolov5_tiny_forward.3} parent=5 // pred_fallthru
      _
    %p136 = scmp.le.s32.totalorder 1, %s9
    %p137 = scmp.lt.s32.totalorder %s9, 3
    %p138 = pnand %p136, %p137
    %p139 = pneg %p138
    // Predicated region
    $region29: #{yolov5_tiny_forward.3} parent=5 // pred_check
      _
    $region30: #{yolov5_tiny_forward.3} parent=5 // pred_check_branch
      %141 = sbr.rel (%p138) target = $region32
    $region31: #{yolov5_tiny_forward.3} parent=5 // pred_region
      %s142 = ssub.s32 %s9, 1
      %p143 = scmp.lt.s32.totalorder %s14, 1
      %s144 = scalar_select %p143, %s14, 1
      %s145 = smul.addr %s144, 18
      %s146 = smul.addr %s145, 4
      %s147 = scalar_lea.vmem %s0, %s146
      %p148 = pneg %p35
      %p149 = pneg %p32
      %p150 = pneg %p56
      %p151 = pneg %p53
      %p152 = pneg %p77
      %p153 = pneg %p74
      %p154 = pneg %p103
      %p155 = pneg %p100
      %p156 = scmp.lt.s32.totalorder %s14, 1
      %s157 = scalar_select %p156, %s14, 1
      %s158 = smul.addr %s157, 8
      %s159 = smul.addr %s158, 4
      %s160 = scalar_lea.vmem %s3, %s159
      %p161 = scmp.lt.s32.totalorder %s14, 1
      %s162 = scalar_select %p161, %s14, 1
      %s163 = smul.addr %s162, 18
      %s164 = smul.addr %s163, 4
      %s165 = scalar_lea.vmem %s0, %s164
      %p166 = scmp.lt.s32.totalorder %s14, 1
      %s167 = scalar_select %p166, %s14, 1
      %s168 = smul.addr %s167, 8
      %s169 = smul.addr %s168, 4
      %s170 = scalar_lea.vmem %s3, %s169
      %v172 = vld [vmem:[%s165] sm:$0xf]
      %v173 = vld [vmem:[%s165 + $0x4] sm:$0x1]
      %v174 = vld [vmem:[%s165 + $0x8] sm:$0xf]
      %v175 = vld [vmem:[%s165 + $0xc] sm:$0x1]
      %v176 = vld [vmem:[%s165 + $0x10] sm:$0xf]
      %v177 = vld [vmem:[%s165 + $0x14] sm:$0x1]
      %v178 = vld [vmem:[%s165 + $0x18] sm:$0xf]
      %v179 = vld [vmem:[%s165 + $0x1c] sm:$0x1]
      %v180 = vld [vmem:[%s165 + $0x20] sm:$0xf]
      %v181 = vld [vmem:[%s165 + $0x24] sm:$0x1]
      %v182 = vld [vmem:[%s165 + $0x28] sm:$0xf]
      %v183 = vld [vmem:[%s165 + $0x2c] sm:$0x1]
      %v184 = vld [vmem:[%s165 + $0x30] sm:$0xf]
      %v185 = vld [vmem:[%s165 + $0x34] sm:$0x1]
      %v186 = vld [vmem:[%s165 + $0x38] sm:$0xf]
      %v187 = vld [vmem:[%s165 + $0x3c] sm:$0x1]
      %v188 = vld [vmem:[%s165 + $0x40] sm:$0xf]
      %v189 = vld [vmem:[%s165 + $0x44] sm:$0x1]
      %v192 = vunpack.c.l.b16 %v172
      %v193 = vunpack.c.l.b16 %v173
      %v194 = vpack.c.b16 %v193, %v192
      %v196 = vshrl.u32 %v194, 16
      %v198 = vshll.u32 %v194, 16
      %v200 = vrot.slane %v198, 1
      %v201 = vor.u32 %v196, %v200
      %202 = vrot.lane.b32.xlu0 %v201, 12
      %v203 = vpop.permute.xlu0 %202
      %v205 = vunpack.c.l.b16 %v174
      %v206 = vpack.c.b16 %v205, %v205
      %207 = vrot.lane.b32.xlu0 %v206, 24
      %v208 = vpop.permute.xlu0 %207
      %v210 = vunpack.c.l.b16 %v175
      %v211 = vpack.c.b16 %v210, %v205
      %v213 = vshrl.u32 %v211, 16
      %v215 = vshll.u32 %v211, 16
      %v217 = vrot.slane %v215, 1
      %v218 = vor.u32 %v213, %v217
      %219 = vrot.lane.b32.xlu0 %v218, 36
      %v220 = vpop.permute.xlu0 %219
      %vm221 = vcmask 97280
      %v224 = vsel %vm221, %v172, %v203
      %vm225 = vcmask 195584
      %v227 = vsel %vm225, %v224, %v208
      %vm228 = vcmask 293888
      %v230 = vsel %vm228, %v227, %v220
      %231 = vrot.lane.b32.xlu0 %v218, 12
      %v232 = vpop.permute.xlu0 %231
      %v234 = vunpack.c.l.b16 %v176
      %v235 = vpack.c.b16 %v234, %v234
      %236 = vrot.lane.b32.xlu0 %v235, 24
      %v237 = vpop.permute.xlu0 %236
      %v239 = vunpack.c.l.b16 %v177
      %v240 = vpack.c.b16 %v239, %v234
      %v242 = vshrl.u32 %v240, 16
      %v244 = vshll.u32 %v240, 16
      %v246 = vrot.slane %v244, 1
      %v247 = vor.u32 %v242, %v246
      %248 = vrot.lane.b32.xlu0 %v247, 36
      %v249 = vpop.permute.xlu0 %248
      %v252 = vsel %vm221, %v174, %v232
      %v254 = vsel %vm225, %v252, %v237
      %v256 = vsel %vm228, %v254, %v249
      %257 = vrot.lane.b32.xlu0 %v247, 12
      %v258 = vpop.permute.xlu0 %257
      %v260 = vunpack.c.l.b16 %v178
      %v261 = vpack.c.b16 %v260, %v260
      %262 = vrot.lane.b32.xlu0 %v261, 24
      %v263 = vpop.permute.xlu0 %262
      %v265 = vunpack.c.l.b16 %v179
      %v266 = vpack.c.b16 %v265, %v260
      %v268 = vshrl.u32 %v266, 16
      %v270 = vshll.u32 %v266, 16
      %v272 = vrot.slane %v270, 1
      %v273 = vor.u32 %v268, %v272
      %274 = vrot.lane.b32.xlu0 %v273, 36
      %v275 = vpop.permute.xlu0 %274
      %v278 = vsel %vm221, %v176, %v258
      %v280 = vsel %vm225, %v278, %v263
      %v282 = vsel %vm228, %v280, %v275
      %283 = vrot.lane.b32.xlu0 %v273, 12
      %v284 = vpop.permute.xlu0 %283
      %v286 = vunpack.c.l.b16 %v180
      %v287 = vpack.c.b16 %v286, %v286
      %288 = vrot.lane.b32.xlu0 %v287, 24
      %v289 = vpop.permute.xlu0 %288
      %v291 = vunpack.c.l.b16 %v181
      %v292 = vpack.c.b16 %v291, %v286
      %v294 = vshrl.u32 %v292, 16
      %v296 = vshll.u32 %v292, 16
      %v298 = vrot.slane %v296, 1
      %v299 = vor.u32 %v294, %v298
      %300 = vrot.lane.b32.xlu0 %v299, 36
      %v301 = vpop.permute.xlu0 %300
      %v304 = vsel %vm221, %v178, %v284
      %v306 = vsel %vm225, %v304, %v289
      %v308 = vsel %vm228, %v306, %v301
      %309 = vrot.lane.b32.xlu0 %v299, 12
      %v310 = vpop.permute.xlu0 %309
      %v312 = vunpack.c.l.b16 %v182
      %v313 = vpack.c.b16 %v312, %v312
      %314 = vrot.lane.b32.xlu0 %v313, 24
      %v315 = vpop.permute.xlu0 %314
      %v317 = vunpack.c.l.b16 %v183
      %v318 = vpack.c.b16 %v317, %v312
      %v320 = vshrl.u32 %v318, 16
      %v322 = vshll.u32 %v318, 16
      %v324 = vrot.slane %v322, 1
      %v325 = vor.u32 %v320, %v324
      %326 = vrot.lane.b32.xlu0 %v325, 36
      %v327 = vpop.permute.xlu0 %326
      %v330 = vsel %vm221, %v180, %v310
      %v332 = vsel %vm225, %v330, %v315
      %v334 = vsel %vm228, %v332, %v327
      %335 = vrot.lane.b32.xlu0 %v325, 12
      %v336 = vpop.permute.xlu0 %335
      %v338 = vunpack.c.l.b16 %v184
      %v339 = vpack.c.b16 %v338, %v338
      %340 = vrot.lane.b32.xlu0 %v339, 24
      %v341 = vpop.permute.xlu0 %340
      %v343 = vunpack.c.l.b16 %v185
      %v344 = vpack.c.b16 %v343, %v338
      %v346 = vshrl.u32 %v344, 16
      %v348 = vshll.u32 %v344, 16
      %v350 = vrot.slane %v348, 1
      %v351 = vor.u32 %v346, %v350
      %352 = vrot.lane.b32.xlu0 %v351, 36
      %v353 = vpop.permute.xlu0 %352
      %v356 = vsel %vm221, %v182, %v336
      %v358 = vsel %vm225, %v356, %v341
      %v360 = vsel %vm228, %v358, %v353
      %361 = vrot.lane.b32.xlu0 %v351, 12
      %v362 = vpop.permute.xlu0 %361
      %v364 = vunpack.c.l.b16 %v186
      %v365 = vpack.c.b16 %v364, %v364
      %366 = vrot.lane.b32.xlu0 %v365, 24
      %v367 = vpop.permute.xlu0 %366
      %v369 = vunpack.c.l.b16 %v187
      %v370 = vpack.c.b16 %v369, %v364
      %v372 = vshrl.u32 %v370, 16
      %v374 = vshll.u32 %v370, 16
      %v376 = vrot.slane %v374, 1
      %v377 = vor.u32 %v372, %v376
      %378 = vrot.lane.b32.xlu0 %v377, 36
      %v379 = vpop.permute.xlu0 %378
      %v382 = vsel %vm221, %v184, %v362
      %v384 = vsel %vm225, %v382, %v367
      %v386 = vsel %vm228, %v384, %v379
      %387 = vrot.lane.b32.xlu0 %v377, 12
      %v388 = vpop.permute.xlu0 %387
      %v390 = vunpack.c.l.b16 %v188
      %v391 = vpack.c.b16 %v390, %v390
      %392 = vrot.lane.b32.xlu0 %v391, 24
      %v393 = vpop.permute.xlu0 %392
      %v395 = vunpack.c.l.b16 %v189
      %v396 = vpack.c.b16 %v395, %v390
      %v398 = vshrl.u32 %v396, 16
      %v400 = vshll.u32 %v396, 16
      %v402 = vrot.slane %v400, 1
      %v403 = vor.u32 %v398, %v402
      %404 = vrot.lane.b32.xlu0 %v403, 36
      %v405 = vpop.permute.xlu0 %404
      %v408 = vsel %vm221, %v186, %v388
      %v410 = vsel %vm225, %v408, %v393
      %v412 = vsel %vm228, %v410, %v405
      %v414 = vrot.slane %v256, 4
      %v416 = vrot.slane %v308, 4
      %v418 = vrot.slane %v360, 4
      %v420 = vrot.slane %v412, 4
      %vm421 = vcmask 1043456
      %v423 = vsel %vm421, %v230, %v414
      %v425 = vsel %vm421, %v282, %v416
      %v427 = vsel %vm421, %v334, %v418
      %v429 = vsel %vm421, %v386, %v420
      %v430 = vld [vmem:[%s1] sm:$0xf]
      %v431 = vld [vmem:[%s1 + $0x4] sm:$0xf]
      %v432 = vld [vmem:[%s1 + $0x8] sm:$0xf]
      %v433 = vld [vmem:[%s1 + $0xc] sm:$0xf]
      %v434 = vld [vmem:[%s1 + $0x10] sm:$0xf]
      %v435 = vld [vmem:[%s1 + $0x14] sm:$0xf]
      %v436 = vld [vmem:[%s2] sm:$0x1]
      %v438 = vlaneseq
      %v439 = vshrl.u32 %v438, 7
      %v440 = vsub.s32 0, %v439
      %v441 = vrot.slane %v436, %v440
      %v449 = vunpack.c.l.b16 %v430
      %v450 = vunpack.c.l.b16 %v431
      %v451 = vunpack.c.l.b16 %v432
      %v452 = vunpack.c.l.b16 %v433
      %v453 = vunpack.c.l.b16 %v434
      %v454 = vunpack.c.l.b16 %v435
      %v455 = vpack.c.b16 %v450, %v449
      %v456 = vpack.c.b16 %v452, %v451
      %v457 = vpack.c.b16 %v454, %v453
      %vm461 = vcmask 392192
      %v462 = vsel %vm461, %v423, 0
      %v464 = vsel %vm461, %v425, 0
      %v466 = vsel %vm461, %v427, 0
      %v468 = vsel %vm461, %v429, 0
      %470 = vmatprep.subr.bf16.mxu0 0
      %471 = vmatpush1.bf16.msra.mxu0 %v455
      %472 = vmatprep.subr.bf16.mxu0 0
      %473 = vmatpush1.bf16.msra.mxu0 %v456
      %474 = vmatprep.subr.bf16.mxu0 0
      %475 = vmatpush1.bf16.msra.mxu0 %v457
      %476 = vmatprep.subr.bf16.mxu0 0
      %477 = vmatpush1.bf16.msra.mxu0 0
      %478 = vmatprep.subr.bf16.mxu0 0
      %479 = vmatpush1.bf16.msra.mxu0 0
      %480 = vmatprep.subr.bf16.mxu0 0
      %481 = vmatpush1.bf16.msra.mxu0 0
      %482 = vmatprep.subr.bf16.mxu0 0
      %483 = vmatpush1.bf16.msra.mxu0 0
      %484 = vmatprep.subr.bf16.mxu0 0
      %485 = vmatpush1.bf16.msra.mxu0 0
      %486 = vmatprep.subr.bf16.mxu0 0
      %487 = vmatpush1.bf16.msra.mxu0 0
      %488 = vmatprep.subr.bf16.mxu0 0
      %489 = vmatpush1.bf16.msra.mxu0 0
      %490 = vmatprep.subr.bf16.mxu0 0
      %491 = vmatpush1.bf16.msra.mxu0 0
      %492 = vmatprep.subr.bf16.mxu0 0
      %493 = vmatpush1.bf16.msra.mxu0 0
      %494 = vmatprep.subr.bf16.mxu0 0
      %495 = vmatpush1.bf16.msra.mxu0 0
      %496 = vmatprep.subr.bf16.mxu0 0
      %497 = vmatpush1.bf16.msra.mxu0 0
      %498 = vmatprep.subr.bf16.mxu0 0
      %499 = vmatpush1.bf16.msra.mxu0 0
      %500 = vmatprep.subr.bf16.mxu0 0
      %501 = vmatpush1.bf16.msra.mxu0 0
      %502 = vmatprep.mubr.bf16.mxu0 0
      %503 = vmatmul.mubr.bf16.gmra.mrb[0].mxu0 %v462
      %v504 = vpop.f32.mrb[0].mxu0
      %v505 = vadd.f32 %v441, %v504
      %v506 = vpop.f32.mrb[0].mxu0
      %v507 = vpop.f32.mrb[0].mxu0
      %v508 = vadd.f32 %v441, %v507
      %v509 = vpop.f32.mrb[0].mxu0
      %510 = vmatprep.mubr.bf16.mxu0 0
      %511 = vmatmul.mubr.bf16.gmra.mrb[0].mxu0 %v464
      %v512 = vpop.f32.mrb[0].mxu0
      %v513 = vadd.f32 %v441, %v512
      %v514 = vpop.f32.mrb[0].mxu0
      %v515 = vpop.f32.mrb[0].mxu0
      %v516 = vadd.f32 %v441, %v515
      %v517 = vpop.f32.mrb[0].mxu0
      %518 = vmatprep.mubr.bf16.mxu0 0
      %519 = vmatmul.mubr.bf16.gmra.mrb[0].mxu0 %v466
      %v520 = vpop.f32.mrb[0].mxu0
      %v521 = vadd.f32 %v441, %v520
      %v522 = vpop.f32.mrb[0].mxu0
      %v523 = vpop.f32.mrb[0].mxu0
      %v524 = vadd.f32 %v441, %v523
      %v525 = vpop.f32.mrb[0].mxu0
      %526 = vmatprep.mubr.bf16.mxu0 0
      %527 = vmatmul.mubr.bf16.gmra.mrb[0].mxu0 %v468
      %v528 = vpop.f32.mrb[0].mxu0
      %v529 = vadd.f32 %v441, %v528
      %v530 = vpop.f32.mrb[0].mxu0
      %v531 = vpop.f32.mrb[0].mxu0
      %v532 = vadd.f32 %v441, %v531
      %v533 = vpop.f32.mrb[0].mxu0
      %534 = vdwg.mxu0
      %v535 = vxor.u32 %v505, 2147483648
      %v536 = vxor.u32 %v508, 2147483648
      %v537 = vxor.u32 %v513, 2147483648
      %v538 = vxor.u32 %v516, 2147483648
      %v539 = vxor.u32 %v521, 2147483648
      %v540 = vxor.u32 %v524, 2147483648
      %v541 = vxor.u32 %v529, 2147483648
      %v542 = vxor.u32 %v532, 2147483648
      %v543 = vmul.f32 %v535, 1.442695
      %v544 = vpow.pop %v543
      %v545 = vmul.f32 %v536, 1.442695
      %v546 = vpow.pop %v545
      %v547 = vmul.f32 %v537, 1.442695
      %v548 = vpow.pop %v547
      %v549 = vmul.f32 %v538, 1.442695
      %v550 = vpow.pop %v549
      %v551 = vmul.f32 %v539, 1.442695
      %v552 = vpow.pop %v551
      %v553 = vmul.f32 %v540, 1.442695
      %v554 = vpow.pop %v553
      %v555 = vmul.f32 %v541, 1.442695
      %v556 = vpow.pop %v555
      %v557 = vmul.f32 %v542, 1.442695
      %v558 = vpow.pop %v557
      %v559 = vadd.f32 %v544, 1.0
      %v560 = vadd.f32 %v546, 1.0
      %v561 = vadd.f32 %v548, 1.0
      %v562 = vadd.f32 %v550, 1.0
      %v563 = vadd.f32 %v552, 1.0
      %v564 = vadd.f32 %v554, 1.0
      %v565 = vadd.f32 %v556, 1.0
      %v566 = vadd.f32 %v558, 1.0
      %v567 = vrcp.pop %v559
      %v568 = vmul.f32 1.0, %v567
      %v569 = vrcp.pop %v560
      %v570 = vmul.f32 1.0, %v569
      %v571 = vrcp.pop %v561
      %v572 = vmul.f32 1.0, %v571
      %v573 = vrcp.pop %v562
      %v574 = vmul.f32 1.0, %v573
      %v575 = vrcp.pop %v563
      %v576 = vmul.f32 1.0, %v575
      %v577 = vrcp.pop %v564
      %v578 = vmul.f32 1.0, %v577
      %v579 = vrcp.pop %v565
      %v580 = vmul.f32 1.0, %v579
      %v581 = vrcp.pop %v566
      %v582 = vmul.f32 1.0, %v581
      %v583 = vmul.f32 %v505, %v568
      %v584 = vmul.f32 %v508, %v570
      %v585 = vmul.f32 %v513, %v572
      %v586 = vmul.f32 %v516, %v574
      %v587 = vmul.f32 %v521, %v576
      %v588 = vmul.f32 %v524, %v578
      %v589 = vmul.f32 %v529, %v580
      %v590 = vmul.f32 %v532, %v582
      %v591 = vpack.c.bf16 %v584, %v583
      %v592 = vpack.c.bf16 %v586, %v585
      %v593 = vpack.c.bf16 %v588, %v587
      %v594 = vpack.c.bf16 %v590, %v589
      %v599 = vunpack.c.l.b16 %v591
      %v600 = vunpack.c.h.b16 %v591
      %v601 = vunpack.c.l.b16 %v592
      %v602 = vunpack.c.h.b16 %v592
      %v603 = vunpack.c.l.b16 %v593
      %v604 = vunpack.c.h.b16 %v593
      %v605 = vunpack.c.l.b16 %v594
      %v606 = vunpack.c.h.b16 %v594
      %v607 = vpack.c.b16 %v599, %v599
      %v608 = vpack.c.b16 %v600, %v600
      %v609 = vpack.c.b16 %v601, %v601
      %v610 = vpack.c.b16 %v602, %v602
      %v611 = vpack.c.b16 %v603, %v603
      %v612 = vpack.c.b16 %v604, %v604
      %v613 = vpack.c.b16 %v605, %v605
      %v614 = vpack.c.b16 %v606, %v606
      %vm623 = vcmask 60416
      %624 = vst.msk [vmem:[%s170] sm:$0xf] %vm623, %v607
      %625 = vst.msk [vmem:[%s170 + $0x4] sm:$0xf] %vm623, %v608
      %626 = vst.msk [vmem:[%s170 + $0x8] sm:$0xf] %vm623, %v609
      %627 = vst.msk [vmem:[%s170 + $0xc] sm:$0xf] %vm623, %v610
      %628 = vst.msk [vmem:[%s170 + $0x10] sm:$0xf] %vm623, %v611
      %629 = vst.msk [vmem:[%s170 + $0x14] sm:$0xf] %vm623, %v612
      %630 = vst.msk [vmem:[%s170 + $0x18] sm:$0xf] %vm623, %v613
      %631 = vst.msk [vmem:[%s170 + $0x1c] sm:$0xf] %vm623, %v614
      %p632 = scmp.lt.s32.totalorder %s14, 1
      %s633 = scalar_select %p632, %s14, 1
      %s634 = smul.addr %s633, 8
      %s635 = smul.addr %s634, 4
      %s636 = scalar_lea.vmem %s3, %s635
      // Predicated region
      $region33: #{yolov5_tiny_forward.3} parent=31 // pred_check
        %p637 = pneg %p100
      $region34: #{yolov5_tiny_forward.3} parent=31 // pred_check_branch
        %639 = sbr.rel (%p637) target = $region36
      $region35: #{yolov5_tiny_forward.3} parent=31 // pred_region
        _
      $region36: #{yolov5_tiny_forward.3} parent=31 // pred_fallthru
        _
    $region32: #{yolov5_tiny_forward.3} parent=5 // pred_fallthru
      _
    %p640 = scmp.le.s32.totalorder 2, %s9
    // Predicated region
    $region37: #{yolov5_tiny_forward.3} parent=5 // pred_check
      %p641 = pneg %p640
    $region38: #{yolov5_tiny_forward.3} parent=5 // pred_check_branch
      %643 = sbr.rel (%p641) target = $region40
    $region39: #{yolov5_tiny_forward.3} parent=5 // pred_region
      %s644 = ssub.s32 %s9, 2
      // Predicated region
      $region41: #{yolov5_tiny_forward.3} parent=39 // pred_check
        %p645 = pneg %p106
      $region42: #{yolov5_tiny_forward.3} parent=39 // pred_check_branch
        %647 = sbr.rel (%p645) target = $region44
      $region43: #{yolov5_tiny_forward.3} parent=39 // pred_region
        %p648 = scmp.lt.s32.totalorder %s15, 1
        %s649 = scalar_select %p648, %s15, 1
        %s650 = smul.addr %s649, 8
        %s651 = smul.addr %s650, 4
        %s652 = scalar_lea.vmem %s3, %s651
      $region44: #{yolov5_tiny_forward.3} parent=39 // pred_fallthru
        _
    $region40: #{yolov5_tiny_forward.3} parent=5 // pred_fallthru
      _
  $region6: #{yolov5_tiny_forward.3} parent=0 // loop_footer
    %s13 = sadd.s32 1, %s9
  $region7: #{yolov5_tiny_forward.3} parent=0 // loop_footer_branch
    %8 = sbr.rel target = $region3
  $region8: #{yolov5_tiny_forward.3} parent=0 // loop_exit
    _

// kernel: yolov5_tiny_forward.4
$region0: #{yolov5_tiny_forward.4}
  #allocation0 [shape = 'u32[]', space=smem, size = 0x4, offset = 0x4, fixed_abs, tag = 'smem constant byte address 0x4 - core index']
  #allocation1 [shape = 'u32[144,128]{1,0:T(1,128)}', space=vmem, size = 0x12000, scoped, tag = 'internal scratch']
  %s0 = inlined_call_operand.vmem [shape: bf16[2,5,5,32], index: 0, kind: input, shape index: {}]
  %s1 = inlined_call_operand.vmem [shape: bf16[128,16], index: 1, kind: input, shape index: {}]
  %s2 = inlined_call_operand.vmem [shape: f32[1,16], index: 2, kind: input, shape index: {}]
  %s3 = inlined_call_operand.vmem [shape: bf16[2,16,16], index: 3, kind: output, shape index: {}]
  %s4 = sld [smem:[#allocation0]]
  $region45: #{yolov5_tiny_forward.4} parent=0
    _
  %s6 = ssub.s32 1, %s4
  %s7 = scalar_select 0, %s6, %s4
  loop: start=0, step=1, limit=4
  $region2: #{yolov5_tiny_forward.4} parent=0 // loop_pre_header
    _
  $region3: #{yolov5_tiny_forward.4} parent=0 // loop_header
    %s9 = sphi 0, %s13
    %p10 = scmp.ge.s32.totalorder %s9, 4
    %s19 = sphi 0, %s21
    %s22 = sphi 0, %s19
    %s23 = sphi 0, %s22
    %s39 = sphi 0, %s23
    %s43 = sphi 0, %s43
    %s45 = sphi 0, %s43
    %s46 = sphi 0, %s45
    %s60 = sphi 0, %s46
    %s64 = sphi 0, %s64
    %s66 = sphi 0, %s64
    %s67 = sphi 0, %s66
    %s81 = sphi 0, %s67
    %s87 = sphi 0, %s89
    %s90 = sphi 0, %s87
    %s91 = sphi 0, %s90
    %s107 = sphi 0, %s91
  $region4: #{yolov5_tiny_forward.4} parent=0 // loop_header_branch
    %12 = sbr.rel (%p10) target = $region8
  $region5: #{yolov5_tiny_forward.4} parent=0 // loop_body
    %s14 = ssub.s32 %s9, 1
    %s15 = ssub.s32 %s9, 2
    %s16 = sadd.s32 %s9, 1
    %s17 = ssub.s32 %s9, %s16
    %p18 = scmp.eq.s32.totalorder %s17, 0
    %s20 = sadd.s32 %s19, 1
    %s21 = scalar_select %p18, %s19, %s20
    %p24 = pneg %p18
    %p25 = scmp.eq.s32.totalorder %s9, 1
    %p26 = por %p24, %p25
    %p27 = scmp.ne.s32.totalorder %s19, %s22
    %p28 = scmp.eq.s32.totalorder %s9, 0
    %p29 = por %p27, %p28
    %p30 = scmp.ne.s32.totalorder %s19, %s22
    %p31 = scmp.eq.s32.totalorder %s14, 1
    %p32 = por %p30, %p31
    %p33 = scmp.ne.s32.totalorder %s22, %s23
    %p34 = scmp.eq.s32.totalorder %s14, 0
    %p35 = por %p33, %p34
    %p36 = scmp.ne.s32.totalorder %s22, %s23
    %p37 = scmp.eq.s32.totalorder %s15, 1
    %p38 = por %p36, %p37
    %p40 = scmp.ne.s32.totalorder %s23, %s39
    %p41 = scmp.eq.s32.totalorder %s15, 0
    %p42 = por %p40, %p41
    %s44 = sadd.s32 %s43, 1
    %p47 = scmp.eq.s32.totalorder %s9, 1
    %p48 = scmp.ne.s32.totalorder %s43, %s45
    %p49 = scmp.eq.s32.totalorder %s9, 0
    %p50 = por %p48, %p49
    %p51 = scmp.ne.s32.totalorder %s43, %s45
    %p52 = scmp.eq.s32.totalorder %s14, 1
    %p53 = por %p51, %p52
    %p54 = scmp.ne.s32.totalorder %s45, %s46
    %p55 = scmp.eq.s32.totalorder %s14, 0
    %p56 = por %p54, %p55
    %p57 = scmp.ne.s32.totalorder %s45, %s46
    %p58 = scmp.eq.s32.totalorder %s15, 1
    %p59 = por %p57, %p58
    %p61 = scmp.ne.s32.totalorder %s46, %s60
    %p62 = scmp.eq.s32.totalorder %s15, 0
    %p63 = por %p61, %p62
    %s65 = sadd.s32 %s64, 1
    %p68 = scmp.eq.s32.totalorder %s9, 1
    %p69 = scmp.ne.s32.totalorder %s64, %s66
    %p70 = scmp.eq.s32.totalorder %s9, 0
    %p71 = por %p69, %p70
    %p72 = scmp.ne.s32.totalorder %s64, %s66
    %p73 = scmp.eq.s32.totalorder %s14, 1
    %p74 = por %p72, %p73
    %p75 = scmp.ne.s32.totalorder %s66, %s67
    %p76 = scmp.eq.s32.totalorder %s14, 0
    %p77 = por %p75, %p76
    %p78 = scmp.ne.s32.totalorder %s66, %s67
    %p79 = scmp.eq.s32.totalorder %s15, 1
    %p80 = por %p78, %p79
    %p82 = scmp.ne.s32.totalorder %s67, %s81
    %p83 = scmp.eq.s32.totalorder %s15, 0
    %p84 = por %p82, %p83
    %s85 = ssub.s32 %s9, %s16
    %p86 = scmp.eq.s32.totalorder %s85, 0
    %s88 = sadd.s32 %s87, 1
    %s89 = scalar_select %p86, %s87, %s88
    %p92 = pneg %p86
    %p93 = scmp.eq.s32.totalorder %s9, 1
    %p94 = por %p92, %p93
    %p95 = scmp.ne.s32.totalorder %s87, %s90
    %p96 = scmp.eq.s32.totalorder %s9, 0
    %p97 = por %p95, %p96
    %p98 = scmp.ne.s32.totalorder %s87, %s90
    %p99 = scmp.eq.s32.totalorder %s14, 1
    %p100 = por %p98, %p99
    %p101 = scmp.ne.s32.totalorder %s90, %s91
    %p102 = scmp.eq.s32.totalorder %s14, 0
    %p103 = por %p101, %p102
    %p104 = scmp.ne.s32.totalorder %s90, %s91
    %p105 = scmp.eq.s32.totalorder %s15, 1
    %p106 = por %p104, %p105
    %p108 = scmp.ne.s32.totalorder %s91, %s107
    %p109 = scmp.eq.s32.totalorder %s15, 0
    %p110 = por %p108, %p109
    %p111 = scmp.le.s32.totalorder 1, %s9
    %p112 = scmp.lt.s32.totalorder %s9, 3
    %p113 = pnand %p111, %p112
    %p114 = pneg %p113
    // Predicated region
    $region9: #{yolov5_tiny_forward.4} parent=5 // pred_check
      _
    $region10: #{yolov5_tiny_forward.4} parent=5 // pred_check_branch
      %116 = sbr.rel (%p113) target = $region12
    $region11: #{yolov5_tiny_forward.4} parent=5 // pred_region
      %s117 = ssub.s32 %s9, 1
      // Predicated region
      $region13: #{yolov5_tiny_forward.4} parent=11 // pred_check
        %p118 = pneg %p56
      $region14: #{yolov5_tiny_forward.4} parent=11 // pred_check_branch
        %120 = sbr.rel (%p118) target = $region16
      $region15: #{yolov5_tiny_forward.4} parent=11 // pred_region
        _
      $region16: #{yolov5_tiny_forward.4} parent=11 // pred_fallthru
        _
      // Predicated region
      $region17: #{yolov5_tiny_forward.4} parent=11 // pred_check
        %p121 = pneg %p77
      $region18: #{yolov5_tiny_forward.4} parent=11 // pred_check_branch
        %123 = sbr.rel (%p121) target = $region20
      $region19: #{yolov5_tiny_forward.4} parent=11 // pred_region
        _
      $region20: #{yolov5_tiny_forward.4} parent=11 // pred_fallthru
        _
    $region12: #{yolov5_tiny_forward.4} parent=5 // pred_fallthru
      _
    %p124 = scmp.lt.s32.totalorder %s9, 2
    // Predicated region
    $region21: #{yolov5_tiny_forward.4} parent=5 // pred_check
      %p125 = pneg %p124
    $region22: #{yolov5_tiny_forward.4} parent=5 // pred_check_branch
      %127 = sbr.rel (%p125) target = $region24
    $region23: #{yolov5_tiny_forward.4} parent=5 // pred_region
      // Predicated region
      $region25: #{yolov5_tiny_forward.4} parent=23 // pred_check
        %p128 = pneg %p29
      $region26: #{yolov5_tiny_forward.4} parent=23 // pred_check_branch
        %130 = sbr.rel (%p128) target = $region28
      $region27: #{yolov5_tiny_forward.4} parent=23 // pred_region
        %p131 = scmp.lt.s32.totalorder %s9, 1
        %s132 = scalar_select %p131, %s9, 1
        %s133 = smul.addr %s132, 5
        %s134 = smul.addr %s133, 4
        %s135 = scalar_lea.vmem %s0, %s134
      $region28: #{yolov5_tiny_forward.4} parent=23 // pred_fallthru
        _
    $region24: #{yolov5_tiny_forward.4} parent=5 // pred_fallthru
      _
    %p136 = scmp.le.s32.totalorder 1, %s9
    %p137 = scmp.lt.s32.totalorder %s9, 3
    %p138 = pnand %p136, %p137
    %p139 = pneg %p138
    // Predicated region
    $region29: #{yolov5_tiny_forward.4} parent=5 // pred_check
      _
    $region30: #{yolov5_tiny_forward.4} parent=5 // pred_check_branch
      %141 = sbr.rel (%p138) target = $region32
    $region31: #{yolov5_tiny_forward.4} parent=5 // pred_region
      %s142 = ssub.s32 %s9, 1
      %p143 = scmp.lt.s32.totalorder %s14, 1
      %s144 = scalar_select %p143, %s14, 1
      %s145 = smul.addr %s144, 5
      %s146 = smul.addr %s145, 4
      %s147 = scalar_lea.vmem %s0, %s146
      %p148 = pneg %p35
      %p149 = pneg %p32
      %p150 = pneg %p56
      %p151 = pneg %p53
      %p152 = pneg %p77
      %p153 = pneg %p74
      %p154 = pneg %p103
      %p155 = pneg %p100
      %p156 = scmp.lt.s32.totalorder %s14, 1
      %s157 = scalar_select %p156, %s14, 1
      %s158 = smul.addr %s157, 2
      %s159 = smul.addr %s158, 4
      %s160 = scalar_lea.vmem %s3, %s159
      %p161 = scmp.lt.s32.totalorder %s14, 1
      %s162 = scalar_select %p161, %s14, 1
      %s163 = smul.addr %s162, 5
      %s164 = smul.addr %s163, 4
      %s165 = scalar_lea.vmem %s0, %s164
      %p166 = scmp.lt.s32.totalorder %s14, 1
      %s167 = scalar_select %p166, %s14, 1
      %s168 = smul.addr %s167, 2
      %s169 = smul.addr %s168, 4
      %s170 = scalar_lea.vmem %s3, %s169
      %v172 = vld [vmem:[%s165] sm:$0x7]
      %v173 = vld [vmem:[%s165 + $0x4] sm:$0x7]
      %v174 = vld [vmem:[%s165 + $0x8] sm:$0x7]
      %v175 = vld [vmem:[%s165 + $0xc] sm:$0x7]
      %v176 = vld [vmem:[%s165 + $0x10] sm:$0x7]
      %v178 = vunpack.c.l.b16 %v172
      %v179 = vpack.c.b16 %v178, %v178
      %v181 = vshrl.u32 %v179, 16
      %v183 = vshll.u32 %v179, 16
      %v185 = vrot.slane %v183, 1
      %v186 = vor.u32 %v181, %v185
      %187 = vrot.lane.b32.xlu0 %v186, 32
      %v188 = vpop.permute.xlu0 %187
      %v190 = vunpack.c.l.b16 %v173
      %v191 = vpack.c.b16 %v190, %v190
      %192 = vrot.lane.b32.xlu0 %v191, 64
      %v193 = vpop.permute.xlu0 %192
      %v195 = vshrl.u32 %v191, 16
      %v197 = vshll.u32 %v191, 16
      %v199 = vrot.slane %v197, 1
      %v200 = vor.u32 %v195, %v199
      %201 = vrot.lane.b32.xlu0 %v200, 96
      %v202 = vpop.permute.xlu0 %201
      %vm203 = vcmask 261120
      %v206 = vsel %vm203, %v172, %v188
      %vm207 = vcmask 523264
      %v209 = vsel %vm207, %v206, %v193
      %vm210 = vcmask 785408
      %v212 = vsel %vm210, %v209, %v202
      %213 = vrot.lane.b32.xlu0 %v200, 32
      %v214 = vpop.permute.xlu0 %213
      %v216 = vunpack.c.l.b16 %v174
      %v217 = vpack.c.b16 %v216, %v216
      %218 = vrot.lane.b32.xlu0 %v217, 64
      %v219 = vpop.permute.xlu0 %218
      %v221 = vshrl.u32 %v217, 16
      %v223 = vshll.u32 %v217, 16
      %v225 = vrot.slane %v223, 1
      %v226 = vor.u32 %v221, %v225
      %227 = vrot.lane.b32.xlu0 %v226, 96
      %v228 = vpop.permute.xlu0 %227
      %v231 = vsel %vm203, %v173, %v214
      %v233 = vsel %vm207, %v231, %v219
      %v235 = vsel %vm210, %v233, %v228
      %236 = vrot.lane.b32.xlu0 %v226, 32
      %v237 = vpop.permute.xlu0 %236
      %v239 = vunpack.c.l.b16 %v175
      %v240 = vpack.c.b16 %v239, %v239
      %241 = vrot.lane.b32.xlu0 %v240, 64
      %v242 = vpop.permute.xlu0 %241
      %v244 = vshrl.u32 %v240, 16
      %v246 = vshll.u32 %v240, 16
      %v248 = vrot.slane %v246, 1
      %v249 = vor.u32 %v244, %v248
      %250 = vrot.lane.b32.xlu0 %v249, 96
      %v251 = vpop.permute.xlu0 %250
      %v254 = vsel %vm203, %v174, %v237
      %v256 = vsel %vm207, %v254, %v242
      %v258 = vsel %vm210, %v256, %v251
      %259 = vrot.lane.b32.xlu0 %v249, 32
      %v260 = vpop.permute.xlu0 %259
      %v262 = vunpack.c.l.b16 %v176
      %v263 = vpack.c.b16 %v262, %v262
      %264 = vrot.lane.b32.xlu0 %v263, 64
      %v265 = vpop.permute.xlu0 %264
      %v267 = vshrl.u32 %v263, 16
      %v269 = vshll.u32 %v263, 16
      %v271 = vrot.slane %v269, 1
      %v272 = vor.u32 %v267, %v271
      %273 = vrot.lane.b32.xlu0 %v272, 96
      %v274 = vpop.permute.xlu0 %273
      %v277 = vsel %vm203, %v175, %v260
      %v279 = vsel %vm207, %v277, %v265
      %v281 = vsel %vm210, %v279, %v274
      %v283 = vrot.slane %v235, 6
      %v285 = vrot.slane %v258, 4
      %v287 = vrot.slane %v281, 2
      %vm288 = vcmask 1041408
      %v290 = vsel %vm288, %v212, %v283
      %vm291 = vcmask 1043456
      %v293 = vsel %vm291, %v290, %v285
      %vm294 = vcmask 1045504
      %v296 = vsel %vm294, %v293, %v287
      %v298 = vld [vmem:[%s1] sm:$0xf]
      %v299 = vld [vmem:[%s1 + $0x4] sm:$0xf]
      %v300 = vld [vmem:[%s1 + $0x8] sm:$0xf]
      %v301 = vld [vmem:[%s1 + $0xc] sm:$0xf]
      %v302 = vld [vmem:[%s1 + $0x10] sm:$0xf]
      %v303 = vld [vmem:[%s1 + $0x14] sm:$0xf]
      %v304 = vld [vmem:[%s1 + $0x18] sm:$0xf]
      %v305 = vld [vmem:[%s1 + $0x1c] sm:$0xf]
      %v306 = vld [vmem:[%s1 + $0x20] sm:$0xf]
      %v307 = vld [vmem:[%s1 + $0x24] sm:$0xf]
      %v308 = vld [vmem:[%s1 + $0x28] sm:$0xf]
      %v309 = vld [vmem:[%s1 + $0x2c] sm:$0xf]
      %v310 = vld [vmem:[%s1 + $0x30] sm:$0xf]
      %v311 = vld [vmem:[%s1 + $0x34] sm:$0xf]
      %v312 = vld [vmem:[%s1 + $0x38] sm:$0xf]
      %v313 = vld [vmem:[%s1 + $0x3c] sm:$0xf]
      %v314 = vld [vmem:[%s2] sm:$0x1]
      %v316 = vlaneseq
      %v317 = vshrl.u32 %v316, 7
      %v318 = vsub.s32 0, %v317
      %v319 = vrot.slane %v314, %v318
      %v337 = vunpack.c.l.b16 %v298
      %v338 = vunpack.c.l.b16 %v299
      %v339 = vunpack.c.l.b16 %v300
      %v340 = vunpack.c.l.b16 %v301
      %v341 = vunpack.c.l.b16 %v302
      %v342 = vunpack.c.l.b16 %v303
      %v343 = vunpack.c.l.b16 %v304
      %v344 = vunpack.c.l.b16 %v305
      %v345 = vunpack.c.l.b16 %v306
      %v346 = vunpack.c.l.b16 %v307
      %v347 = vunpack.c.l.b16 %v308
      %v348 = vunpack.c.l.b16 %v309
      %v349 = vunpack.c.l.b16 %v310
      %v350 = vunpack.c.l.b16 %v311
      %v351 = vunpack.c.l.b16 %v312
      %v352 = vunpack.c.l.b16 %v313
      %v353 = vpack.c.b16 %v338, %v337
      %v354 = vpack.c.b16 %v340, %v339
      %v355 = vpack.c.b16 %v342, %v341
      %v356 = vpack.c.b16 %v344, %v343
      %v357 = vpack.c.b16 %v346, %v345
      %v358 = vpack.c.b16 %v348, %v347
      %v359 = vpack.c.b16 %v350, %v349
      %v360 = vpack.c.b16 %v352, %v351
      %369 = vmatprep.subr.bf16.mxu0 0
      %370 = vmatpush1.bf16.msra.mxu0 %v353
      %371 = vmatprep.subr.bf16.mxu0 0
      %372 = vmatpush1.bf16.msra.mxu0 %v354
      %373 = vmatprep.subr.bf16.mxu0 0
      %374 = vmatpush1.bf16.msra.mxu0 %v355
      %375 = vmatprep.subr.bf16.mxu0 0
      %376 = vmatpush1.bf16.msra.mxu0 %v356
      %377 = vmatprep.subr.bf16.mxu0 0
      %378 = vmatpush1.bf16.msra.mxu0 %v357
      %379 = vmatprep.subr.bf16.mxu0 0
      %380 = vmatpush1.bf16.msra.mxu0 %v358
      %381 = vmatprep.subr.bf16.mxu0 0
      %382 = vmatpush1.bf16.msra.mxu0 %v359
      %383 = vmatprep.subr.bf16.mxu0 0
      %384 = vmatpush1.bf16.msra.mxu0 %v360
      %385 = vmatprep.subr.bf16.mxu0 0
      %386 = vmatpush1.bf16.msra.mxu0 0
      %387 = vmatprep.subr.bf16.mxu0 0
      %388 = vmatpush1.bf16.msra.mxu0 0
      %389 = vmatprep.subr.bf16.mxu0 0
      %390 = vmatpush1.bf16.msra.mxu0 0
      %391 = vmatprep.subr.bf16.mxu0 0
      %392 = vmatpush1.bf16.msra.mxu0 0
      %393 = vmatprep.subr.bf16.mxu0 0
      %394 = vmatpush1.bf16.msra.mxu0 0
      %395 = vmatprep.subr.bf16.mxu0 0
      %396 = vmatpush1.bf16.msra.mxu0 0
      %397 = vmatprep.subr.bf16.mxu0 0
      %398 = vmatpush1.bf16.msra.mxu0 0
      %399 = vmatprep.subr.bf16.mxu0 0
      %400 = vmatpush1.bf16.msra.mxu0 0
      %401 = vmatprep.mubr.bf16.mxu0 0
      %402 = vmatmul.mubr.bf16.gmra.mrb[0].mxu0 %v296
      %v403 = vpop.f32.mrb[0].mxu0
      %v404 = vadd.f32 %v319, %v403
      %v405 = vpop.f32.mrb[0].mxu0
      %v406 = vpop.f32.mrb[0].mxu0
      %v407 = vadd.f32 %v319, %v406
      %v408 = vpop.f32.mrb[0].mxu0
      %409 = vdwg.mxu0
      %v410 = vxor.u32 %v404, 2147483648
      %v411 = vxor.u32 %v407, 2147483648
      %v412 = vmul.f32 %v410, 1.442695
      %v413 = vpow.pop %v412
      %v414 = vmul.f32 %v411, 1.442695
      %v415 = vpow.pop %v414
      %v416 = vadd.f32 %v413, 1.0
      %v417 = vadd.f32 %v415, 1.0
      %v418 = vrcp.pop %v416
      %v419 = vmul.f32 1.0, %v418
      %v420 = vrcp.pop %v417
      %v421 = vmul.f32 1.0, %v420
      %v422 = vmul.f32 %v404, %v419
      %v423 = vmul.f32 %v407, %v421
      %v424 = vpack.c.bf16 %v423, %v422
      %v426 = vunpack.c.l.b16 %v424
      %v427 = vunpack.c.h.b16 %v424
      %v428 = vpack.c.b16 %v426, %v426
      %v429 = vpack.c.b16 %v427, %v427
      %vm432 = vcmask 125952
      %433 = vst.msk [vmem:[%s170] sm:$0xf] %vm432, %v428
      %434 = vst.msk [vmem:[%s170 + $0x4] sm:$0xf] %vm432, %v429
      %p435 = scmp.lt.s32.totalorder %s14, 1
      %s436 = scalar_select %p435, %s14, 1
      %s437 = smul.addr %s436, 2
      %s438 = smul.addr %s437, 4
      %s439 = scalar_lea.vmem %s3, %s438
      // Predicated region
      $region33: #{yolov5_tiny_forward.4} parent=31 // pred_check
        %p440 = pneg %p100
      $region34: #{yolov5_tiny_forward.4} parent=31 // pred_check_branch
        %442 = sbr.rel (%p440) target = $region36
      $region35: #{yolov5_tiny_forward.4} parent=31 // pred_region
        _
      $region36: #{yolov5_tiny_forward.4} parent=31 // pred_fallthru
        _
    $region32: #{yolov5_tiny_forward.4} parent=5 // pred_fallthru
      _
    %p443 = scmp.le.s32.totalorder 2, %s9
    // Predicated region
    $region37: #{yolov5_tiny_forward.4} parent=5 // pred_check
      %p444 = pneg %p443
    $region38: #{yolov5_tiny_forward.4} parent=5 // pred_check_branch
      %446 = sbr.rel (%p444) target = $region40
    $region39: #{yolov5_tiny_forward.4} parent=5 // pred_region
      %s447 = ssub.s32 %s9, 2
      // Predicated region
      $region41: #{yolov5_tiny_forward.4} parent=39 // pred_check
        %p448 = pneg %p106
      $region42: #{yolov5_tiny_forward.4} parent=39 // pred_check_branch
        %450 = sbr.rel (%p448) target = $region44
      $region43: #{yolov5_tiny_forward.4} parent=39 // pred_region
        %p451 = scmp.lt.s32.totalorder %s15, 1
        %s452 = scalar_select %p451, %s15, 1
        %s453 = smul.addr %s452, 2
        %s454 = smul.addr %s453, 4
        %s455 = scalar_lea.vmem %s3, %s454
      $region44: #{yolov5_tiny_forward.4} parent=39 // pred_fallthru
        _
    $region40: #{yolov5_tiny_forward.4} parent=5 // pred_fallthru
      _
  $region6: #{yolov5_tiny_forward.4} parent=0 // loop_footer
    %s13 = sadd.s32 1, %s9
  $region7: #{yolov5_tiny_forward.4} parent=0 // loop_footer_branch
    %8 = sbr.rel target = $region3
  $region8: #{yolov5_tiny_forward.4} parent=0 // loop_exit
    _

// kernel: yolov5_tiny_forward.5
$region0: #{yolov5_tiny_forward.5}
  #allocation0 [shape = 'u32[]', space=smem, size = 0x4, offset = 0x4, fixed_abs, tag = 'smem constant byte address 0x4 - core index']
  #allocation1 [shape = 'u32[144,128]{1,0:T(1,128)}', space=vmem, size = 0x12000, scoped, tag = 'internal scratch']
  #allocation2 [shape = 'bf16[6,6,8]{2,1,0:T(8,128)(2,1)}', space=vmem, size = 0x3000, scoped, tag = 'scratch operand']
  %s0 = inlined_call_operand.vmem [shape: bf16[2,16,16], index: 0, kind: input, shape index: {}]
  %s1 = inlined_call_operand.vmem [shape: bf16[16,8], index: 1, kind: input, shape index: {}]
  %s2 = inlined_call_operand.vmem [shape: f32[1,8], index: 2, kind: input, shape index: {}]
  %s3 = inlined_call_operand.vmem [shape: bf16[72,16], index: 3, kind: input, shape index: {}]
  %s4 = inlined_call_operand.vmem [shape: f32[1,16], index: 4, kind: input, shape index: {}]
  %s5 = inlined_call_operand.vmem [shape: bf16[16,32], index: 5, kind: input, shape index: {}]
  %s6 = inlined_call_operand.vmem [shape: f32[1,32], index: 6, kind: input, shape index: {}]
  %s7 = inlined_call_operand.vmem [shape: f32[2,16,32], index: 7, kind: output, shape index: {}]
  %s8 = sld [smem:[#allocation0]]
  $region61: #{yolov5_tiny_forward.5} parent=0
    _
  %s10 = ssub.s32 1, %s8
  %s11 = scalar_select 0, %s10, %s8
  loop: start=0, step=1, limit=4
  $region2: #{yolov5_tiny_forward.5} parent=0 // loop_pre_header
    _
  $region3: #{yolov5_tiny_forward.5} parent=0 // loop_header
    %s13 = sphi 0, %s17
    %p14 = scmp.ge.s32.totalorder %s13, 4
    %s23 = sphi 0, %s25
    %s26 = sphi 0, %s23
    %s27 = sphi 0, %s26
    %s43 = sphi 0, %s27
    %s47 = sphi 0, %s47
    %s49 = sphi 0, %s47
    %s50 = sphi 0, %s49
    %s64 = sphi 0, %s50
    %s68 = sphi 0, %s68
    %s70 = sphi 0, %s68
    %s71 = sphi 0, %s70
    %s85 = sphi 0, %s71
    %s89 = sphi 0, %s89
    %s91 = sphi 0, %s89
    %s92 = sphi 0, %s91
    %s106 = sphi 0, %s92
    %s110 = sphi 0, %s110
    %s112 = sphi 0, %s110
    %s113 = sphi 0, %s112
    %s127 = sphi 0, %s113
    %s131 = sphi 0, %s131
    %s133 = sphi 0, %s131
    %s134 = sphi 0, %s133
    %s148 = sphi 0, %s134
    %s152 = sphi 0, %s152
    %s154 = sphi 0, %s152
    %s155 = sphi 0, %s154
    %s169 = sphi 0, %s155
    %s175 = sphi 0, %s177
    %s178 = sphi 0, %s175
    %s179 = sphi 0, %s178
    %s195 = sphi 0, %s179
  $region4: #{yolov5_tiny_forward.5} parent=0 // loop_header_branch
    %16 = sbr.rel (%p14) target = $region8
  $region5: #{yolov5_tiny_forward.5} parent=0 // loop_body
    %s18 = ssub.s32 %s13, 1
    %s19 = ssub.s32 %s13, 2
    %s20 = sadd.s32 %s13, 1
    %s21 = ssub.s32 %s13, %s20
    %p22 = scmp.eq.s32.totalorder %s21, 0
    %s24 = sadd.s32 %s23, 1
    %s25 = scalar_select %p22, %s23, %s24
    %p28 = pneg %p22
    %p29 = scmp.eq.s32.totalorder %s13, 1
    %p30 = por %p28, %p29
    %p31 = scmp.ne.s32.totalorder %s23, %s26
    %p32 = scmp.eq.s32.totalorder %s13, 0
    %p33 = por %p31, %p32
    %p34 = scmp.ne.s32.totalorder %s23, %s26
    %p35 = scmp.eq.s32.totalorder %s18, 1
    %p36 = por %p34, %p35
    %p37 = scmp.ne.s32.totalorder %s26, %s27
    %p38 = scmp.eq.s32.totalorder %s18, 0
    %p39 = por %p37, %p38
    %p40 = scmp.ne.s32.totalorder %s26, %s27
    %p41 = scmp.eq.s32.totalorder %s19, 1
    %p42 = por %p40, %p41
    %p44 = scmp.ne.s32.totalorder %s27, %s43
    %p45 = scmp.eq.s32.totalorder %s19, 0
    %p46 = por %p44, %p45
    %s48 = sadd.s32 %s47, 1
    %p51 = scmp.eq.s32.totalorder %s13, 1
    %p52 = scmp.ne.s32.totalorder %s47, %s49
    %p53 = scmp.eq.s32.totalorder %s13, 0
    %p54 = por %p52, %p53
    %p55 = scmp.ne.s32.totalorder %s47, %s49
    %p56 = scmp.eq.s32.totalorder %s18, 1
    %p57 = por %p55, %p56
    %p58 = scmp.ne.s32.totalorder %s49, %s50
    %p59 = scmp.eq.s32.totalorder %s18, 0
    %p60 = por %p58, %p59
    %p61 = scmp.ne.s32.totalorder %s49, %s50
    %p62 = scmp.eq.s32.totalorder %s19, 1
    %p63 = por %p61, %p62
    %p65 = scmp.ne.s32.totalorder %s50, %s64
    %p66 = scmp.eq.s32.totalorder %s19, 0
    %p67 = por %p65, %p66
    %s69 = sadd.s32 %s68, 1
    %p72 = scmp.eq.s32.totalorder %s13, 1
    %p73 = scmp.ne.s32.totalorder %s68, %s70
    %p74 = scmp.eq.s32.totalorder %s13, 0
    %p75 = por %p73, %p74
    %p76 = scmp.ne.s32.totalorder %s68, %s70
    %p77 = scmp.eq.s32.totalorder %s18, 1
    %p78 = por %p76, %p77
    %p79 = scmp.ne.s32.totalorder %s70, %s71
    %p80 = scmp.eq.s32.totalorder %s18, 0
    %p81 = por %p79, %p80
    %p82 = scmp.ne.s32.totalorder %s70, %s71
    %p83 = scmp.eq.s32.totalorder %s19, 1
    %p84 = por %p82, %p83
    %p86 = scmp.ne.s32.totalorder %s71, %s85
    %p87 = scmp.eq.s32.totalorder %s19, 0
    %p88 = por %p86, %p87
    %s90 = sadd.s32 %s89, 1
    %p93 = scmp.eq.s32.totalorder %s13, 1
    %p94 = scmp.ne.s32.totalorder %s89, %s91
    %p95 = scmp.eq.s32.totalorder %s13, 0
    %p96 = por %p94, %p95
    %p97 = scmp.ne.s32.totalorder %s89, %s91
    %p98 = scmp.eq.s32.totalorder %s18, 1
    %p99 = por %p97, %p98
    %p100 = scmp.ne.s32.totalorder %s91, %s92
    %p101 = scmp.eq.s32.totalorder %s18, 0
    %p102 = por %p100, %p101
    %p103 = scmp.ne.s32.totalorder %s91, %s92
    %p104 = scmp.eq.s32.totalorder %s19, 1
    %p105 = por %p103, %p104
    %p107 = scmp.ne.s32.totalorder %s92, %s106
    %p108 = scmp.eq.s32.totalorder %s19, 0
    %p109 = por %p107, %p108
    %s111 = sadd.s32 %s110, 1
    %p114 = scmp.eq.s32.totalorder %s13, 1
    %p115 = scmp.ne.s32.totalorder %s110, %s112
    %p116 = scmp.eq.s32.totalorder %s13, 0
    %p117 = por %p115, %p116
    %p118 = scmp.ne.s32.totalorder %s110, %s112
    %p119 = scmp.eq.s32.totalorder %s18, 1
    %p120 = por %p118, %p119
    %p121 = scmp.ne.s32.totalorder %s112, %s113
    %p122 = scmp.eq.s32.totalorder %s18, 0
    %p123 = por %p121, %p122
    %p124 = scmp.ne.s32.totalorder %s112, %s113
    %p125 = scmp.eq.s32.totalorder %s19, 1
    %p126 = por %p124, %p125
    %p128 = scmp.ne.s32.totalorder %s113, %s127
    %p129 = scmp.eq.s32.totalorder %s19, 0
    %p130 = por %p128, %p129
    %s132 = sadd.s32 %s131, 1
    %p135 = scmp.eq.s32.totalorder %s13, 1
    %p136 = scmp.ne.s32.totalorder %s131, %s133
    %p137 = scmp.eq.s32.totalorder %s13, 0
    %p138 = por %p136, %p137
    %p139 = scmp.ne.s32.totalorder %s131, %s133
    %p140 = scmp.eq.s32.totalorder %s18, 1
    %p141 = por %p139, %p140
    %p142 = scmp.ne.s32.totalorder %s133, %s134
    %p143 = scmp.eq.s32.totalorder %s18, 0
    %p144 = por %p142, %p143
    %p145 = scmp.ne.s32.totalorder %s133, %s134
    %p146 = scmp.eq.s32.totalorder %s19, 1
    %p147 = por %p145, %p146
    %p149 = scmp.ne.s32.totalorder %s134, %s148
    %p150 = scmp.eq.s32.totalorder %s19, 0
    %p151 = por %p149, %p150
    %s153 = sadd.s32 %s152, 1
    %p156 = scmp.eq.s32.totalorder %s13, 1
    %p157 = scmp.ne.s32.totalorder %s152, %s154
    %p158 = scmp.eq.s32.totalorder %s13, 0
    %p159 = por %p157, %p158
    %p160 = scmp.ne.s32.totalorder %s152, %s154
    %p161 = scmp.eq.s32.totalorder %s18, 1
    %p162 = por %p160, %p161
    %p163 = scmp.ne.s32.totalorder %s154, %s155
    %p164 = scmp.eq.s32.totalorder %s18, 0
    %p165 = por %p163, %p164
    %p166 = scmp.ne.s32.totalorder %s154, %s155
    %p167 = scmp.eq.s32.totalorder %s19, 1
    %p168 = por %p166, %p167
    %p170 = scmp.ne.s32.totalorder %s155, %s169
    %p171 = scmp.eq.s32.totalorder %s19, 0
    %p172 = por %p170, %p171
    %s173 = ssub.s32 %s13, %s20
    %p174 = scmp.eq.s32.totalorder %s173, 0
    %s176 = sadd.s32 %s175, 1
    %s177 = scalar_select %p174, %s175, %s176
    %p180 = pneg %p174
    %p181 = scmp.eq.s32.totalorder %s13, 1
    %p182 = por %p180, %p181
    %p183 = scmp.ne.s32.totalorder %s175, %s178
    %p184 = scmp.eq.s32.totalorder %s13, 0
    %p185 = por %p183, %p184
    %p186 = scmp.ne.s32.totalorder %s175, %s178
    %p187 = scmp.eq.s32.totalorder %s18, 1
    %p188 = por %p186, %p187
    %p189 = scmp.ne.s32.totalorder %s178, %s179
    %p190 = scmp.eq.s32.totalorder %s18, 0
    %p191 = por %p189, %p190
    %p192 = scmp.ne.s32.totalorder %s178, %s179
    %p193 = scmp.eq.s32.totalorder %s19, 1
    %p194 = por %p192, %p193
    %p196 = scmp.ne.s32.totalorder %s179, %s195
    %p197 = scmp.eq.s32.totalorder %s19, 0
    %p198 = por %p196, %p197
    %p199 = scmp.le.s32.totalorder 1, %s13
    %p200 = scmp.lt.s32.totalorder %s13, 3
    %p201 = pnand %p199, %p200
    %p202 = pneg %p201
    // Predicated region
    $region9: #{yolov5_tiny_forward.5} parent=5 // pred_check
      _
    $region10: #{yolov5_tiny_forward.5} parent=5 // pred_check_branch
      %204 = sbr.rel (%p201) target = $region12
    $region11: #{yolov5_tiny_forward.5} parent=5 // pred_region
      %s205 = ssub.s32 %s13, 1
      // Predicated region
      $region13: #{yolov5_tiny_forward.5} parent=11 // pred_check
        %p206 = pneg %p60
      $region14: #{yolov5_tiny_forward.5} parent=11 // pred_check_branch
        %208 = sbr.rel (%p206) target = $region16
      $region15: #{yolov5_tiny_forward.5} parent=11 // pred_region
        _
      $region16: #{yolov5_tiny_forward.5} parent=11 // pred_fallthru
        _
      // Predicated region
      $region17: #{yolov5_tiny_forward.5} parent=11 // pred_check
        %p209 = pneg %p81
      $region18: #{yolov5_tiny_forward.5} parent=11 // pred_check_branch
        %211 = sbr.rel (%p209) target = $region20
      $region19: #{yolov5_tiny_forward.5} parent=11 // pred_region
        _
      $region20: #{yolov5_tiny_forward.5} parent=11 // pred_fallthru
        _
      // Predicated region
      $region21: #{yolov5_tiny_forward.5} parent=11 // pred_check
        %p212 = pneg %p102
      $region22: #{yolov5_tiny_forward.5} parent=11 // pred_check_branch
        %214 = sbr.rel (%p212) target = $region24
      $region23: #{yolov5_tiny_forward.5} parent=11 // pred_region
        _
      $region24: #{yolov5_tiny_forward.5} parent=11 // pred_fallthru
        _
      // Predicated region
      $region25: #{yolov5_tiny_forward.5} parent=11 // pred_check
        %p215 = pneg %p123
      $region26: #{yolov5_tiny_forward.5} parent=11 // pred_check_branch
        %217 = sbr.rel (%p215) target = $region28
      $region27: #{yolov5_tiny_forward.5} parent=11 // pred_region
        _
      $region28: #{yolov5_tiny_forward.5} parent=11 // pred_fallthru
        _
      // Predicated region
      $region29: #{yolov5_tiny_forward.5} parent=11 // pred_check
        %p218 = pneg %p144
      $region30: #{yolov5_tiny_forward.5} parent=11 // pred_check_branch
        %220 = sbr.rel (%p218) target = $region32
      $region31: #{yolov5_tiny_forward.5} parent=11 // pred_region
        _
      $region32: #{yolov5_tiny_forward.5} parent=11 // pred_fallthru
        _
      // Predicated region
      $region33: #{yolov5_tiny_forward.5} parent=11 // pred_check
        %p221 = pneg %p165
      $region34: #{yolov5_tiny_forward.5} parent=11 // pred_check_branch
        %223 = sbr.rel (%p221) target = $region36
      $region35: #{yolov5_tiny_forward.5} parent=11 // pred_region
        _
      $region36: #{yolov5_tiny_forward.5} parent=11 // pred_fallthru
        _
    $region12: #{yolov5_tiny_forward.5} parent=5 // pred_fallthru
      _
    %p224 = scmp.lt.s32.totalorder %s13, 2
    // Predicated region
    $region37: #{yolov5_tiny_forward.5} parent=5 // pred_check
      %p225 = pneg %p224
    $region38: #{yolov5_tiny_forward.5} parent=5 // pred_check_branch
      %227 = sbr.rel (%p225) target = $region40
    $region39: #{yolov5_tiny_forward.5} parent=5 // pred_region
      // Predicated region
      $region41: #{yolov5_tiny_forward.5} parent=39 // pred_check
        %p228 = pneg %p33
      $region42: #{yolov5_tiny_forward.5} parent=39 // pred_check_branch
        %230 = sbr.rel (%p228) target = $region44
      $region43: #{yolov5_tiny_forward.5} parent=39 // pred_region
        %p231 = scmp.lt.s32.totalorder %s13, 1
        %s232 = scalar_select %p231, %s13, 1
        %s233 = smul.addr %s232, 2
        %s234 = smul.addr %s233, 4
        %s235 = scalar_lea.vmem %s0, %s234
      $region44: #{yolov5_tiny_forward.5} parent=39 // pred_fallthru
        _
    $region40: #{yolov5_tiny_forward.5} parent=5 // pred_fallthru
      _
    %p236 = scmp.le.s32.totalorder 1, %s13
    %p237 = scmp.lt.s32.totalorder %s13, 3
    %p238 = pnand %p236, %p237
    %p239 = pneg %p238
    // Predicated region
    $region45: #{yolov5_tiny_forward.5} parent=5 // pred_check
      _
    $region46: #{yolov5_tiny_forward.5} parent=5 // pred_check_branch
      %241 = sbr.rel (%p238) target = $region48
    $region47: #{yolov5_tiny_forward.5} parent=5 // pred_region
      %s242 = ssub.s32 %s13, 1
      %p243 = scmp.lt.s32.totalorder %s18, 1
      %s244 = scalar_select %p243, %s18, 1
      %s245 = smul.addr %s244, 2
      %s246 = smul.addr %s245, 4
      %s247 = scalar_lea.vmem %s0, %s246
      %p248 = pneg %p39
      %p249 = pneg %p36
      %p250 = pneg %p60
      %p251 = pneg %p57
      %p252 = pneg %p81
      %p253 = pneg %p78
      %p254 = pneg %p102
      %p255 = pneg %p99
      %p256 = pneg %p123
      %p257 = pneg %p120
      %p258 = pneg %p144
      %p259 = pneg %p141
      %p260 = pneg %p165
      %p261 = pneg %p162
      %p262 = pneg %p191
      %p263 = pneg %p188
      %p264 = scmp.lt.s32.totalorder %s18, 1
      %s265 = scalar_select %p264, %s18, 1
      %s266 = smul.addr %s265, 2
      %s267 = smul.addr %s266, 8
      %s268 = scalar_lea.vmem %s7, %s267
      %p269 = scmp.lt.s32.totalorder %s18, 1
      %s270 = scalar_select %p269, %s18, 1
      %s271 = smul.addr %s270, 2
      %s272 = smul.addr %s271, 4
      %s273 = scalar_lea.vmem %s0, %s272
      %p274 = scmp.lt.s32.totalorder %s18, 1
      %s275 = scalar_select %p274, %s18, 1
      %s276 = smul.addr %s275, 2
      %s277 = smul.addr %s276, 8
      %s278 = scalar_lea.vmem %s7, %s277
      %v280 = vld [vmem:[%s273] sm:$0xf]
      %v281 = vld [vmem:[%s273 + $0x4] sm:$0xf]
      %v282 = vld [vmem:[%s1] sm:$0xf]
      %v283 = vld [vmem:[%s1 + $0x4] sm:$0xf]
      %v284 = vld [vmem:[%s2] sm:$0x1]
      %v286 = vlaneseq
      %v287 = vshrl.u32 %v286, 7
      %v288 = vsub.s32 0, %v287
      %v289 = vrot.slane %v284, %v288
      %v293 = vunpack.c.l.b16 %v280
      %v294 = vunpack.c.l.b16 %v281
      %v295 = vpack.c.b16 %v294, %v293
      %v298 = vunpack.c.l.b16 %v282
      %v299 = vunpack.c.l.b16 %v283
      %v300 = vpack.c.b16 %v299, %v298
      %vm302 = vcmask 130048
      %v304 = vsel %vm302, %v295, 0
      %306 = vmatprep.subr.bf16.mxu0 0
      %307 = vmatpush1.bf16.msra.mxu0 %v300
      %308 = vmatprep.subr.bf16.mxu0 0
      %309 = vmatpush1.bf16.msra.mxu0 0
      %310 = vmatprep.subr.bf16.mxu0 0
      %311 = vmatpush1.bf16.msra.mxu0 0
      %312 = vmatprep.subr.bf16.mxu0 0
      %313 = vmatpush1.bf16.msra.mxu0 0
      %314 = vmatprep.subr.bf16.mxu0 0
      %315 = vmatpush1.bf16.msra.mxu0 0
      %316 = vmatprep.subr.bf16.mxu0 0
      %317 = vmatpush1.bf16.msra.mxu0 0
      %318 = vmatprep.subr.bf16.mxu0 0
      %319 = vmatpush1.bf16.msra.mxu0 0
      %320 = vmatprep.subr.bf16.mxu0 0
      %321 = vmatpush1.bf16.msra.mxu0 0
      %322 = vmatprep.subr.bf16.mxu0 0
      %323 = vmatpush1.bf16.msra.mxu0 0
      %324 = vmatprep.subr.bf16.mxu0 0
      %325 = vmatpush1.bf16.msra.mxu0 0
      %326 = vmatprep.subr.bf16.mxu0 0
      %327 = vmatpush1.bf16.msra.mxu0 0
      %328 = vmatprep.subr.bf16.mxu0 0
      %329 = vmatpush1.bf16.msra.mxu0 0
      %330 = vmatprep.subr.bf16.mxu0 0
      %331 = vmatpush1.bf16.msra.mxu0 0
      %332 = vmatprep.subr.bf16.mxu0 0
      %333 = vmatpush1.bf16.msra.mxu0 0
      %334 = vmatprep.subr.bf16.mxu0 0
      %335 = vmatpush1.bf16.msra.mxu0 0
      %336 = vmatprep.subr.bf16.mxu0 0
      %337 = vmatpush1.bf16.msra.mxu0 0
      %338 = vmatprep.mubr.bf16.mxu0 0
      %339 = vmatmul.mubr.bf16.gmra.mrb[0].mxu0 %v304
      %v340 = vpop.f32.mrb[0].mxu0
      %v341 = vadd.f32 %v289, %v340
      %v342 = vpop.f32.mrb[0].mxu0
      %v343 = vpop.f32.mrb[0].mxu0
      %v344 = vadd.f32 %v289, %v343
      %v345 = vpop.f32.mrb[0].mxu0
      %346 = vdwg.mxu0
      %v347 = vxor.u32 %v341, 2147483648
      %v348 = vxor.u32 %v344, 2147483648
      %v349 = vmul.f32 %v347, 1.442695
      %v350 = vpow.pop %v349
      %v351 = vmul.f32 %v348, 1.442695
      %v352 = vpow.pop %v351
      %v353 = vadd.f32 %v350, 1.0
      %v354 = vadd.f32 %v352, 1.0
      %v355 = vrcp.pop %v353
      %v356 = vmul.f32 1.0, %v355
      %v357 = vrcp.pop %v354
      %v358 = vmul.f32 1.0, %v357
      %v359 = vmul.f32 %v341, %v356
      %v360 = vmul.f32 %v344, %v358
      %v361 = vpack.c.bf16 %v360, %v359
      %vm362 = vcmask 59392
      %363 = vst.msk [vmem:[#allocation2] sm:$0x7] %vm362, 0
      %364 = vst.msk [vmem:[#allocation2 + $0x4] sm:$0x7] %vm362, 0
      %365 = vst.msk [vmem:[#allocation2 + $0x8] sm:$0x7] %vm362, 0
      %366 = vst.msk [vmem:[#allocation2 + $0xc] sm:$0x7] %vm362, 0
      %367 = vst.msk [vmem:[#allocation2 + $0x10] sm:$0x7] %vm362, 0
      %368 = vst.msk [vmem:[#allocation2 + $0x14] sm:$0x7] %vm362, 0
      %v370 = vunpack.c.l.b16 %v361
      %v371 = vpack.c.b16 %v370, %v370
      %v373 = vshrl.u32 %v371, 16
      %v375 = vrot.slane %v373, 7
      %v376 = vshll.u32 %v371, 16
      %v378 = vor.u32 %v375, %v376
      %s380 = scalar_lea.vmem [#allocation2], 4
      %vm381 = vcmask 59392
      %vm382 = vsmask.f32 2306
      %vm383 = vmand %vm381, %vm382
      %v384 = vld [vmem:[%s380] sm:$0x7]
      %v385 = vsel %vm383, %v378, %v384
      %386 = vst [vmem:[%s380] sm:$0x7] %v385
      %v387 = vrot.slane %v373, 5
      %v388 = vrot.slane %v376, 6
      %v389 = vor.u32 %v387, %v388
      %v390 = vrot.slane %v389, 4
      %s392 = scalar_lea.vmem [#allocation2], 8
      %v393 = vld [vmem:[%s392] sm:$0x7]
      %v394 = vsel %vm383, %v390, %v393
      %395 = vst [vmem:[%s392] sm:$0x7] %v394
      %v396 = vunpack.c.h.b16 %v361
      %v397 = vpack.c.b16 %v396, %v396
      %v399 = vshrl.u32 %v397, 16
      %v401 = vrot.slane %v399, 7
      %v402 = vshll.u32 %v397, 16
      %v404 = vor.u32 %v401, %v402
      %s406 = scalar_lea.vmem [#allocation2], 12
      %v407 = vld [vmem:[%s406] sm:$0x7]
      %v408 = vsel %vm383, %v404, %v407
      %409 = vst [vmem:[%s406] sm:$0x7] %v408
      %v410 = vrot.slane %v399, 5
      %v411 = vrot.slane %v402, 6
      %v412 = vor.u32 %v410, %v411
      %v413 = vrot.slane %v412, 4
      %s415 = scalar_lea.vmem [#allocation2], 16
      %v416 = vld [vmem:[%s415] sm:$0x7]
      %v417 = vsel %vm383, %v413, %v416
      %418 = vst [vmem:[%s415] sm:$0x7] %v417
      %v419 = vld [vmem:[#allocation2] sm:$0x7]
      %v420 = vld [vmem:[#allocation2 + $0x4] sm:$0x7]
      %v421 = vld [vmem:[#allocation2 + $0x8] sm:$0x7]
      %v422 = vld [vmem:[#allocation2 + $0xc] sm:$0x7]
      %v423 = vld [vmem:[#allocation2 + $0x10] sm:$0x7]
      %v424 = vld [vmem:[#allocation2 + $0x14] sm:$0x7]
      %v426 = vunpack.c.l.b16 %v419
      %v427 = vpack.c.b16 %v426, %v426
      %v429 = vshrl.u32 %v427, 16
      %v431 = vshll.u32 %v427, 16
      %v433 = vrot.slane %v431, 1
      %v434 = vor.u32 %v429, %v433
      %435 = vrot.lane.b32.xlu0 %v434, 8
      %v436 = vpop.permute.xlu0 %435
      %v437 = vrot.slane %v427, 1
      %438 = vrot.lane.b32.xlu0 %v437, 16
      %v439 = vpop.permute.xlu0 %438
      %v441 = vunpack.c.l.b16 %v420
      %v442 = vpack.c.b16 %v441, %v441
      %443 = vrot.lane.b32.xlu0 %v442, 24
      %v444 = vpop.permute.xlu0 %443
      %v446 = vshrl.u32 %v442, 16
      %v448 = vshll.u32 %v442, 16
      %v450 = vrot.slane %v448, 1
      %v451 = vor.u32 %v446, %v450
      %452 = vrot.lane.b32.xlu0 %v451, 32
      %v453 = vpop.permute.xlu0 %452
      %v454 = vrot.slane %v442, 1
      %455 = vrot.lane.b32.xlu0 %v454, 40
      %v456 = vpop.permute.xlu0 %455
      %v458 = vunpack.c.l.b16 %v421
      %v459 = vpack.c.b16 %v458, %v458
      %460 = vrot.lane.b32.xlu0 %v459, 48
      %v461 = vpop.permute.xlu0 %460
      %v463 = vshrl.u32 %v459, 16
      %v465 = vshll.u32 %v459, 16
      %v467 = vrot.slane %v465, 1
      %v468 = vor.u32 %v463, %v467
      %469 = vrot.lane.b32.xlu0 %v468, 56
      %v470 = vpop.permute.xlu0 %469
      %v471 = vrot.slane %v459, 1
      %472 = vrot.lane.b32.xlu0 %v471, 64
      %v473 = vpop.permute.xlu0 %472
      %vm474 = vcmask 64512
      %v477 = vsel %vm474, %v419, %v436
      %v479 = vsel %vm302, %v477, %v439
      %vm480 = vcmask 195584
      %v482 = vsel %vm480, %v479, %v444
      %vm483 = vcmask 261120
      %v485 = vsel %vm483, %v482, %v453
      %vm486 = vcmask 326656
      %v488 = vsel %vm486, %v485, %v456
      %vm489 = vcmask 392192
      %v491 = vsel %vm489, %v488, %v461
      %vm492 = vcmask 457728
      %v494 = vsel %vm492, %v491, %v470
      %vm495 = vcmask 523264
      %v497 = vsel %vm495, %v494, %v473
      %498 = vrot.lane.b32.xlu0 %v451, 8
      %v499 = vpop.permute.xlu0 %498
      %500 = vrot.lane.b32.xlu0 %v454, 16
      %v501 = vpop.permute.xlu0 %500
      %502 = vrot.lane.b32.xlu0 %v459, 24
      %v503 = vpop.permute.xlu0 %502
      %504 = vrot.lane.b32.xlu0 %v468, 32
      %v505 = vpop.permute.xlu0 %504
      %506 = vrot.lane.b32.xlu0 %v471, 40
      %v507 = vpop.permute.xlu0 %506
      %v509 = vunpack.c.l.b16 %v422
      %v510 = vpack.c.b16 %v509, %v509
      %511 = vrot.lane.b32.xlu0 %v510, 48
      %v512 = vpop.permute.xlu0 %511
      %v514 = vshrl.u32 %v510, 16
      %v516 = vshll.u32 %v510, 16
      %v518 = vrot.slane %v516, 1
      %v519 = vor.u32 %v514, %v518
      %520 = vrot.lane.b32.xlu0 %v519, 56
      %v521 = vpop.permute.xlu0 %520
      %v522 = vrot.slane %v510, 1
      %523 = vrot.lane.b32.xlu0 %v522, 64
      %v524 = vpop.permute.xlu0 %523
      %v527 = vsel %vm474, %v420, %v499
      %v529 = vsel %vm302, %v527, %v501
      %v531 = vsel %vm480, %v529, %v503
      %v533 = vsel %vm483, %v531, %v505
      %v535 = vsel %vm486, %v533, %v507
      %v537 = vsel %vm489, %v535, %v512
      %v539 = vsel %vm492, %v537, %v521
      %v541 = vsel %vm495, %v539, %v524
      %542 = vrot.lane.b32.xlu0 %v468, 8
      %v543 = vpop.permute.xlu0 %542
      %544 = vrot.lane.b32.xlu0 %v471, 16
      %v545 = vpop.permute.xlu0 %544
      %546 = vrot.lane.b32.xlu0 %v510, 24
      %v547 = vpop.permute.xlu0 %546
      %548 = vrot.lane.b32.xlu0 %v519, 32
      %v549 = vpop.permute.xlu0 %548
      %550 = vrot.lane.b32.xlu0 %v522, 40
      %v551 = vpop.permute.xlu0 %550
      %v553 = vunpack.c.l.b16 %v423
      %v554 = vpack.c.b16 %v553, %v553
      %555 = vrot.lane.b32.xlu0 %v554, 48
      %v556 = vpop.permute.xlu0 %555
      %v558 = vshrl.u32 %v554, 16
      %v560 = vshll.u32 %v554, 16
      %v562 = vrot.slane %v560, 1
      %v563 = vor.u32 %v558, %v562
      %564 = vrot.lane.b32.xlu0 %v563, 56
      %v565 = vpop.permute.xlu0 %564
      %v566 = vrot.slane %v554, 1
      %567 = vrot.lane.b32.xlu0 %v566, 64
      %v568 = vpop.permute.xlu0 %567
      %v571 = vsel %vm474, %v421, %v543
      %v573 = vsel %vm302, %v571, %v545
      %v575 = vsel %vm480, %v573, %v547
      %v577 = vsel %vm483, %v575, %v549
      %v579 = vsel %vm486, %v577, %v551
      %v581 = vsel %vm489, %v579, %v556
      %v583 = vsel %vm492, %v581, %v565
      %v585 = vsel %vm495, %v583, %v568
      %586 = vrot.lane.b32.xlu0 %v519, 8
      %v587 = vpop.permute.xlu0 %586
      %588 = vrot.lane.b32.xlu0 %v522, 16
      %v589 = vpop.permute.xlu0 %588
      %590 = vrot.lane.b32.xlu0 %v554, 24
      %v591 = vpop.permute.xlu0 %590
      %592 = vrot.lane.b32.xlu0 %v563, 32
      %v593 = vpop.permute.xlu0 %592
      %594 = vrot.lane.b32.xlu0 %v566, 40
      %v595 = vpop.permute.xlu0 %594
      %v597 = vunpack.c.l.b16 %v424
      %v598 = vpack.c.b16 %v597, %v597
      %599 = vrot.lane.b32.xlu0 %v598, 48
      %v600 = vpop.permute.xlu0 %599
      %v602 = vshrl.u32 %v598, 16
      %v604 = vshll.u32 %v598, 16
      %v606 = vrot.slane %v604, 1
      %v607 = vor.u32 %v602, %v606
      %608 = vrot.lane.b32.xlu0 %v607, 56
      %v609 = vpop.permute.xlu0 %608
      %v610 = vrot.slane %v598, 1
      %611 = vrot.lane.b32.xlu0 %v610, 64
      %v612 = vpop.permute.xlu0 %611
      %v615 = vsel %vm474, %v422, %v587
      %v617 = vsel %vm302, %v615, %v589
      %v619 = vsel %vm480, %v617, %v591
      %v621 = vsel %vm483, %v619, %v593
      %v623 = vsel %vm486, %v621, %v595
      %v625 = vsel %vm489, %v623, %v600
      %v627 = vsel %vm492, %v625, %v609
      %v629 = vsel %vm495, %v627, %v612
      %v631 = vrot.slane %v541, 6
      %v633 = vrot.slane %v585, 4
      %v635 = vrot.slane %v629, 2
      %vm636 = vcmask 1041408
      %v638 = vsel %vm636, %v497, %v631
      %vm639 = vcmask 1043456
      %v641 = vsel %vm639, %v638, %v633
      %vm642 = vcmask 1045504
      %v644 = vsel %vm642, %v641, %v635
      %v645 = vld [vmem:[%s3] sm:$0xf]
      %v646 = vld [vmem:[%s3 + $0x4] sm:$0xf]
      %v647 = vld [vmem:[%s3 + $0x8] sm:$0xf]
      %v648 = vld [vmem:[%s3 + $0xc] sm:$0xf]
      %v649 = vld [vmem:[%s3 + $0x10] sm:$0xf]
      %v650 = vld [vmem:[%s3 + $0x14] sm:$0xf]
      %v651 = vld [vmem:[%s3 + $0x18] sm:$0xf]
      %v652 = vld [vmem:[%s3 + $0x1c] sm:$0xf]
      %v653 = vld [vmem:[%s3 + $0x20] sm:$0xf]
      %v654 = vld [vmem:[%s4] sm:$0x1]
      %v656 = vlaneseq
      %v657 = vshrl.u32 %v656, 7
      %v658 = vsub.s32 0, %v657
      %v659 = vrot.slane %v654, %v658
      %v670 = vunpack.c.l.b16 %v645
      %v671 = vunpack.c.l.b16 %v646
      %v672 = vunpack.c.l.b16 %v647
      %v673 = vunpack.c.l.b16 %v648
      %v674 = vunpack.c.l.b16 %v649
      %v675 = vunpack.c.l.b16 %v650
      %v676 = vunpack.c.l.b16 %v651
      %v677 = vunpack.c.l.b16 %v652
      %v678 = vunpack.c.l.b16 %v653
      %v679 = vpack.c.b16 %v671, %v670
      %v680 = vpack.c.b16 %v673, %v672
      %v681 = vpack.c.b16 %v675, %v674
      %v682 = vpack.c.b16 %v677, %v676
      %v683 = vpack.c.b16 %v678, %v678
      %vm688 = vcmask 588800
      %v689 = vsel %vm688, %v644, 0
      %v692 = vsel %vm639, %v683, 0
      %694 = vmatprep.subr.bf16.mxu0 0
      %695 = vmatpush1.bf16.msra.mxu0 %v679
      %696 = vmatprep.subr.bf16.mxu0 0
      %697 = vmatpush1.bf16.msra.mxu0 %v680
      %698 = vmatprep.subr.bf16.mxu0 0
      %699 = vmatpush1.bf16.msra.mxu0 %v681
      %700 = vmatprep.subr.bf16.mxu0 0
      %701 = vmatpush1.bf16.msra.mxu0 %v682
      %702 = vmatprep.subr.bf16.mxu0 0
      %703 = vmatpush1.bf16.msra.mxu0 %v692
      %704 = vmatprep.subr.bf16.mxu0 0
      %705 = vmatpush1.bf16.msra.mxu0 0
      %706 = vmatprep.subr.bf16.mxu0 0
      %707 = vmatpush1.bf16.msra.mxu0 0
      %708 = vmatprep.subr.bf16.mxu0 0
      %709 = vmatpush1.bf16.msra.mxu0 0
      %710 = vmatprep.subr.bf16.mxu0 0
      %711 = vmatpush1.bf16.msra.mxu0 0
      %712 = vmatprep.subr.bf16.mxu0 0
      %713 = vmatpush1.bf16.msra.mxu0 0
      %714 = vmatprep.subr.bf16.mxu0 0
      %715 = vmatpush1.bf16.msra.mxu0 0
      %716 = vmatprep.subr.bf16.mxu0 0
      %717 = vmatpush1.bf16.msra.mxu0 0
      %718 = vmatprep.subr.bf16.mxu0 0
      %719 = vmatpush1.bf16.msra.mxu0 0
      %720 = vmatprep.subr.bf16.mxu0 0
      %721 = vmatpush1.bf16.msra.mxu0 0
      %722 = vmatprep.subr.bf16.mxu0 0
      %723 = vmatpush1.bf16.msra.mxu0 0
      %724 = vmatprep.subr.bf16.mxu0 0
      %725 = vmatpush1.bf16.msra.mxu0 0
      %726 = vmatprep.mubr.bf16.mxu0 0
      %727 = vmatmul.mubr.bf16.gmra.mrb[0].mxu0 %v689
      %v728 = vpop.f32.mrb[0].mxu0
      %v729 = vadd.f32 %v659, %v728
      %v730 = vpop.f32.mrb[0].mxu0
      %v731 = vpop.f32.mrb[0].mxu0
      %v732 = vadd.f32 %v659, %v731
      %v733 = vpop.f32.mrb[0].mxu0
      %734 = vdwg.mxu0
      %v735 = vxor.u32 %v729, 2147483648
      %v736 = vxor.u32 %v732, 2147483648
      %v737 = vmul.f32 %v735, 1.442695
      %v738 = vpow.pop %v737
      %v739 = vmul.f32 %v736, 1.442695
      %v740 = vpow.pop %v739
      %v741 = vadd.f32 %v738, 1.0
      %v742 = vadd.f32 %v740, 1.0
      %v743 = vrcp.pop %v741
      %v744 = vmul.f32 1.0, %v743
      %v745 = vrcp.pop %v742
      %v746 = vmul.f32 1.0, %v745
      %v747 = vmul.f32 %v729, %v744
      %v748 = vmul.f32 %v732, %v746
      %v749 = vunpack.c.l.bf16 %v280
      %v750 = vunpack.c.l.bf16 %v281
      %v751 = vadd.f32 %v747, %v749
      %v752 = vadd.f32 %v748, %v750
      %v753 = vpack.c.bf16 %v752, %v751
      %v754 = vld [vmem:[%s5] sm:$0xf]
      %v755 = vld [vmem:[%s5 + $0x4] sm:$0xf]
      %v756 = vld [vmem:[%s6] sm:$0x1]
      %v758 = vlaneseq
      %v759 = vshrl.u32 %v758, 7
      %v760 = vsub.s32 0, %v759
      %v761 = vrot.slane %v756, %v760
      %v765 = vunpack.c.l.b16 %v754
      %v766 = vunpack.c.l.b16 %v755
      %v767 = vpack.c.b16 %v766, %v765
      %v770 = vsel %vm302, %v753, 0
      %772 = vmatprep.subr.bf16.mxu0 0
      %773 = vmatpush1.bf16.msra.mxu0 %v767
      %774 = vmatprep.subr.bf16.mxu0 0
      %775 = vmatpush1.bf16.msra.mxu0 0
      %776 = vmatprep.subr.bf16.mxu0 0
      %777 = vmatpush1.bf16.msra.mxu0 0
      %778 = vmatprep.subr.bf16.mxu0 0
      %779 = vmatpush1.bf16.msra.mxu0 0
      %780 = vmatprep.subr.bf16.mxu0 0
      %781 = vmatpush1.bf16.msra.mxu0 0
      %782 = vmatprep.subr.bf16.mxu0 0
      %783 = vmatpush1.bf16.msra.mxu0 0
      %784 = vmatprep.subr.bf16.mxu0 0
      %785 = vmatpush1.bf16.msra.mxu0 0
      %786 = vmatprep.subr.bf16.mxu0 0
      %787 = vmatpush1.bf16.msra.mxu0 0
      %788 = vmatprep.subr.bf16.mxu0 0
      %789 = vmatpush1.bf16.msra.mxu0 0
      %790 = vmatprep.subr.bf16.mxu0 0
      %791 = vmatpush1.bf16.msra.mxu0 0
      %792 = vmatprep.subr.bf16.mxu0 0
      %793 = vmatpush1.bf16.msra.mxu0 0
      %794 = vmatprep.subr.bf16.mxu0 0
      %795 = vmatpush1.bf16.msra.mxu0 0
      %796 = vmatprep.subr.bf16.mxu0 0
      %797 = vmatpush1.bf16.msra.mxu0 0
      %798 = vmatprep.subr.bf16.mxu0 0
      %799 = vmatpush1.bf16.msra.mxu0 0
      %800 = vmatprep.subr.bf16.mxu0 0
      %801 = vmatpush1.bf16.msra.mxu0 0
      %802 = vmatprep.subr.bf16.mxu0 0
      %803 = vmatpush1.bf16.msra.mxu0 0
      %804 = vmatprep.mubr.bf16.mxu0 0
      %805 = vmatmul.mubr.bf16.gmra.mrb[0].mxu0 %v770
      %v806 = vpop.f32.mrb[0].mxu0
      %v807 = vadd.f32 %v761, %v806
      %v808 = vpop.f32.mrb[0].mxu0
      %v809 = vpop.f32.mrb[0].mxu0
      %v810 = vadd.f32 %v761, %v809
      %v811 = vpop.f32.mrb[0].mxu0
      %812 = vdwg.mxu0
      %v813 = vxor.u32 %v807, 2147483648
      %v814 = vxor.u32 %v810, 2147483648
      %v815 = vmul.f32 %v813, 1.442695
      %v816 = vpow.pop %v815
      %v817 = vmul.f32 %v814, 1.442695
      %v818 = vpow.pop %v817
      %v819 = vadd.f32 %v816, 1.0
      %v820 = vadd.f32 %v818, 1.0
      %v821 = vrcp.pop %v819
      %v822 = vmul.f32 1.0, %v821
      %v823 = vrcp.pop %v820
      %v824 = vmul.f32 1.0, %v823
      %825 = vst.msk [vmem:[%s278] sm:$0xff] %vm483, %v822
      %826 = vst.msk [vmem:[%s278 + $0x8] sm:$0xff] %vm483, %v824
      %p827 = scmp.lt.s32.totalorder %s18, 1
      %s828 = scalar_select %p827, %s18, 1
      %s829 = smul.addr %s828, 2
      %s830 = smul.addr %s829, 8
      %s831 = scalar_lea.vmem %s7, %s830
      // Predicated region
      $region49: #{yolov5_tiny_forward.5} parent=47 // pred_check
        %p832 = pneg %p188
      $region50: #{yolov5_tiny_forward.5} parent=47 // pred_check_branch
        %834 = sbr.rel (%p832) target = $region52
      $region51: #{yolov5_tiny_forward.5} parent=47 // pred_region
        _
      $region52: #{yolov5_tiny_forward.5} parent=47 // pred_fallthru
        _
    $region48: #{yolov5_tiny_forward.5} parent=5 // pred_fallthru
      _
    %p835 = scmp.le.s32.totalorder 2, %s13
    // Predicated region
    $region53: #{yolov5_tiny_forward.5} parent=5 // pred_check
      %p836 = pneg %p835
    $region54: #{yolov5_tiny_forward.5} parent=5 // pred_check_branch
      %838 = sbr.rel (%p836) target = $region56
    $region55: #{yolov5_tiny_forward.5} parent=5 // pred_region
      %s839 = ssub.s32 %s13, 2
      // Predicated region
      $region57: #{yolov5_tiny_forward.5} parent=55 // pred_check
        %p840 = pneg %p194
      $region58: #{yolov5_tiny_forward.5} parent=55 // pred_check_branch
        %842 = sbr.rel (%p840) target = $region60
      $region59: #{yolov5_tiny_forward.5} parent=55 // pred_region
        %p843 = scmp.lt.s32.totalorder %s19, 1
        %s844 = scalar_select %p843, %s19, 1
        %s845 = smul.addr %s844, 2
        %s846 = smul.addr %s845, 8
        %s847 = scalar_lea.vmem %s7, %s846
      $region60: #{yolov5_tiny_forward.5} parent=55 // pred_fallthru
        _
    $region56: #{yolov5_tiny_forward.5} parent=5 // pred_fallthru
      _
  $region6: #{yolov5_tiny_forward.5} parent=0 // loop_footer
    %s17 = sadd.s32 1, %s13
  $region7: #{yolov5_tiny_forward.5} parent=0 // loop_footer_branch
    %12 = sbr.rel target = $region3
  $region8: #{yolov5_tiny_forward.5} parent=0 // loop_exit
    _

</llo_original>
